<compile_context>
chip_gen: v5e
topology: v5e:2x2
jax: 0.10.0
libtpu: 0.0.40
codegen_flags: <defaults>
</compile_context>

<pallas_src>
import functools

import numpy as np

import jax
import jax.numpy as jnp
from jax.experimental import pallas as pl
from jax.experimental.pallas import tpu as pltpu


# ---------------------------------------------------------------------------
# Fused Pallas kernel: 3 x (conv3x3 + BN [+ residual] + ReLU) + global avgpool
# Layout: channels on sublanes, pixels (b, y, x) flattened on lanes.
# ---------------------------------------------------------------------------

def _encoder_kernel(x_ref, mask_ref, w1_ref, b1_ref, w2_ref, b2_ref,
                    w3_ref, b3_ref, feat_ref, *, H, W, B):
  """One grid step == B samples.

  x_ref    : (Cin_p, B*H*W)  input, channels on sublanes, pixels on lanes
  mask_ref : (9, B*H*W)      f32 0/1 validity per 3x3 tap (lane-dense)
  w*_ref   : (C, 9*Cin_l)    per-layer weights, tap-major K packing,
                             BN scale folded in
  b*_ref   : (C, 1)          folded BN bias (lane-broadcast add)
  feat_ref : (1, C, B)       pooled features (fc = nn.Identity)
  """
  HW = H * W
  M = B * HW
  C = w1_ref.shape[0]

  def conv3x3(h, w_ref, b_ref):
    # h: (Cin_l, M), lanes ordered (b, y, x).  The (y+dy, x+dx) neighbour of
    # flat pixel m = b*HW + y*W + x is pixel m + dy*W + dx, fetched with a
    # static lane rotation; mask row t zeroes pixels whose tap leaves the
    # image (this also kills wrap-around between the B samples packed on the
    # lane axis).  The 9 masked taps are concatenated along the contraction
    # (sublane) axis -> one MXU dot per layer.  Tap order t = (dy+1)*3+(dx+1)
    # matches the (C, 9*Cin_l) weight packing and PyTorch's cross-correlation
    # Conv2d(kernel_size=3, padding=1, bias=False).
    taps = []
    for t in range(9):
      dy, dx = t // 3 - 1, t % 3 - 1
      shift = (-(dy * W + dx)) % M                       # static python int
      rolled = pltpu.roll(h, shift, axis=1) if shift else h
      if dy == 0 and dx == 0:
        taps.append(rolled)                              # centre mask == 1
      else:
        taps.append(rolled * mask_ref[pl.ds(t, 1), :])   # (Cin_l,M)*(1,M)
    rhs = jnp.concatenate(taps, axis=0)                  # (9*Cin_l, M)
    out = jnp.dot(w_ref[...], rhs, preferred_element_type=jnp.float32)
    return out + b_ref[...]                              # (C, M) + (C, 1)

  x0 = x_ref[...]                                        # (Cin_p, M)

  # Stem: conv3x3 -> BN -> ReLU  (BN scale folded into the weights).
  h1 = jnp.maximum(conv3x3(x0, w1_ref, b1_ref), 0.0)     # (C, M), 16 vregs

  # Basic residual block: conv-BN-ReLU, conv-BN, + skip, ReLU.
  h2 = jnp.maximum(conv3x3(h1, w2_ref, b2_ref), 0.0)
  h3 = jnp.maximum(conv3x3(h2, w3_ref, b3_ref) + h1, 0.0)

  # Global average pool per sample: XLU lane reductions (no M=1 pool matmul);
  # each (C, 1) column is placed with a select so the output is one store.
  col = jax.lax.broadcasted_iota(jnp.int32, (C, B), 1)
  pooled = jnp.zeros((C, B), jnp.float32)
  for b in range(B):
    hb = h3[:, b * HW:(b + 1) * HW]                      # aligned lane slice
    mean_b = jnp.mean(hb, axis=1, keepdims=True)         # (C, 1)
    pooled = jnp.where(col == b, mean_b, pooled)
  feat_ref[...] = pooled.reshape(1, C, B)


# ---------------------------------------------------------------------------
# Glue: BN folding, weight packing, lane-dense tap masks
# ---------------------------------------------------------------------------

def _fold_bn(gamma, beta, mean, var, eps=1e-5):
  scale = gamma / jnp.sqrt(var + eps)
  bias = beta - mean * scale
  return scale, bias


def _pack_conv_weight(w_oihw, scale, cin_pad=None):
  """(Cout, Cin, 3, 3) torch layout -> (Cout, 9*Cin_p); BN scale folded in.

  Column index is t*Cin_p + ci with t = ky*3 + kx, matching the kernel's
  tap-concatenated RHS.  `cin_pad` zero-pads Cin so every concat piece is a
  multiple of the 8-row sublane tile.
  """
  c_out, c_in, kh, kw = w_oihw.shape
  if cin_pad is not None and cin_pad > c_in:
    w_oihw = jnp.pad(w_oihw, ((0, 0), (0, cin_pad - c_in), (0, 0), (0, 0)))
    c_in = cin_pad
  w = jnp.transpose(w_oihw, (0, 2, 3, 1)).reshape(c_out, kh * kw * c_in)
  return w * scale[:, None]


def _tap_masks(H, W, B):
  """(9, B*H*W) f32: row t is 1 where pixel (y, x) has a valid (y+dy, x+dx) tap.

  Lane-dense (last dim = B*H*W), so VMEM holds it contiguously instead of the
  previous (9, H*W, 1) layout that padded 128x.  Also zeroes lanes whose
  rolled tap would wrap across the B samples packed on the lane axis.
  """
  y, x = np.mgrid[0:H, 0:W]
  rows = []
  for t in range(9):
    dy, dx = t // 3 - 1, t % 3 - 1
    valid = ((y + dy >= 0) & (y + dy < H) & (x + dx >= 0) & (x + dx < W))
    rows.append(np.tile(valid.reshape(-1).astype(np.float32), B))
  return jnp.asarray(np.stack(rows, axis=0))


# ---------------------------------------------------------------------------
# Encoder forward (single fused pallas_call)
# ---------------------------------------------------------------------------

@functools.partial(jax.jit, static_argnames=("b_tile",))
def encoder_forward(x_nchw, params, b_tile=None):
  """Encoder.forward: backbone features; classifier head replaced by Identity."""
  N, c_in, H, W = x_nchw.shape
  HW = H * W
  C = params["w1"].shape[0]
  if b_tile is None:
    b_tile = N                       # whole batch in a single grid step
  assert N % b_tile == 0
  num_tiles = N // b_tile
  M = b_tile * HW

  # Channels -> sublanes, pixels -> lanes; pad Cin (4) to a sublane tile (8).
  cin_p = ((c_in + 7) // 8) * 8
  x_t = jnp.transpose(x_nchw.astype(jnp.float32), (1, 0, 2, 3))
  x_t = x_t.reshape(c_in, N * HW)
  x_t = jnp.pad(x_t, ((0, cin_p - c_in), (0, 0)))

  s1, b1 = _fold_bn(*params["bn1"])
  s2, b2 = _fold_bn(*params["bn2"])
  s3, b3 = _fold_bn(*params["bn3"])
  w1 = _pack_conv_weight(params["w1"], s1, cin_pad=cin_p)   # (C, 9*cin_p)
  w2 = _pack_conv_weight(params["w2"], s2)                  # (C, 9*C)
  w3 = _pack_conv_weight(params["w3"], s3)                  # (C, 9*C)
  masks = _tap_masks(H, W, b_tile)                          # (9, M)

  kernel = functools.partial(_encoder_kernel, H=H, W=W, B=b_tile)
  const = lambda g: (0, 0)   # grid-invariant inputs (weights / biases / masks)

  feat = pl.pallas_call(
      kernel,
      out_shape=jax.ShapeDtypeStruct((num_tiles, C, b_tile), jnp.float32),
      grid=(num_tiles,),
      in_specs=[
          pl.BlockSpec((cin_p, M), lambda g: (0, g)),   # x, lane-sliced/tile
          pl.BlockSpec((9, M), const),                  # tap masks
          pl.BlockSpec((C, 9 * cin_p), const),          # w1 (BN scale folded)
          pl.BlockSpec((C, 1), const),                  # b1
          pl.BlockSpec((C, 9 * C), const),              # w2
          pl.BlockSpec((C, 1), const),                  # b2
          pl.BlockSpec((C, 9 * C), const),              # w3
          pl.BlockSpec((C, 1), const),                  # b3
      ],
      out_specs=pl.BlockSpec((1, C, b_tile), lambda g: (g, 0, 0)),
      compiler_params=pltpu.CompilerParams(
          dimension_semantics=("parallel",)),
  )(x_t, masks, w1, b1.reshape(C, 1), w2, b2.reshape(C, 1),
    w3, b3.reshape(C, 1))

  # (num_tiles, C, b_tile) -> (N, C); fc = nn.Identity().
  return jnp.transpose(feat, (0, 2, 1)).reshape(N, C)


def init_params(key, c_in=4, c_feat=32):
  ks = jax.random.split(key, 6)

  def bn_params(k):
    k1, k2, k3, k4 = jax.random.split(k, 4)
    gamma = 1.0 + 0.1 * jax.random.normal(k1, (c_feat,), jnp.float32)
    beta = 0.1 * jax.random.normal(k2, (c_feat,), jnp.float32)
    mean = 0.1 * jax.random.normal(k3, (c_feat,), jnp.float32)
    var = 0.5 + jnp.abs(jax.random.normal(k4, (c_feat,), jnp.float32))
    return (gamma, beta, mean, var)

  return {
      "w1": 0.1 * jax.random.normal(ks[0], (c_feat, c_in, 3, 3), jnp.float32),
      "w2": 0.1 * jax.random.normal(ks[1], (c_feat, c_feat, 3, 3),
                                    jnp.float32),
      "w3": 0.1 * jax.random.normal(ks[2], (c_feat, c_feat, 3, 3),
                                    jnp.float32),
      "bn1": bn_params(ks[3]),
      "bn2": bn_params(ks[4]),
      "bn3": bn_params(ks[5]),
  }


def _reference_forward(x_nchw, params, eps=1e-5):
  """Pure-JAX reference of the same representative encoder (validation only)."""
  def conv_bn(x, w, bn):
    y = jax.lax.conv_general_dilated(
        x, w, window_strides=(1, 1), padding="SAME",
        dimension_numbers=("NCHW", "OIHW", "NCHW"),
        precision=jax.lax.Precision.HIGHEST)
    gamma, beta, mean, var = bn
    scale = gamma / jnp.sqrt(var + eps)
    bias = beta - mean * scale
    return y * scale[None, :, None, None] + bias[None, :, None, None]

  h1 = jax.nn.relu(conv_bn(x_nchw, params["w1"], params["bn1"]))
  h2 = jax.nn.relu(conv_bn(h1, params["w2"], params["bn2"]))
  h3 = jax.nn.relu(conv_bn(h2, params["w3"], params["bn3"]) + h1)
  return jnp.mean(h3, axis=(2, 3))


if __name__ == "__main__":
  key = jax.random.PRNGKey(0)
  k_x, k_p = jax.random.split(key)

  # Small shapes consistent with the module: batch=2, channels=4, spatial=16.
  x = jax.random.normal(k_x, (2, 4, 16, 16), jnp.float32)  # NCHW like PyTorch
  params = init_params(k_p, c_in=4, c_feat=32)

  feat = encoder_forward(x, params)
  jax.block_until_ready(feat)
  assert feat.shape == (2, 32), feat.shape
  assert bool(jnp.all(jnp.isfinite(feat)))

  # Validate against a pure-JAX reference (tolerance covers MXU f32 passes).
  ref = _reference_forward(x, params)
  np.testing.assert_allclose(np.asarray(feat), np.asarray(ref),
                             rtol=2e-2, atol=2e-2)
  print("KERNEL_OK")
</pallas_src>

<mosaic_0001>
module attributes {stable_mosaic.version = 11 : i64} {
  func.func @_encoder_kernel(%arg0: i32, %arg1: memref<8x512xf32, #tpu.memory_space<vmem>>, %arg2: memref<9x512xf32, #tpu.memory_space<vmem>>, %arg3: memref<32x72xf32, #tpu.memory_space<vmem>>, %arg4: memref<32x1xf32, #tpu.memory_space<vmem>>, %arg5: memref<32x288xf32, #tpu.memory_space<vmem>>, %arg6: memref<32x1xf32, #tpu.memory_space<vmem>>, %arg7: memref<32x288xf32, #tpu.memory_space<vmem>>, %arg8: memref<32x1xf32, #tpu.memory_space<vmem>>, %arg9: memref<1x32x2xf32, #tpu.memory_space<vmem>>) attributes {dimension_semantics = [#tpu.dimension_semantics<parallel>], iteration_bounds = array<i64: 1>, scalar_prefetch = 0 : i64, scratch_operands = 0 : i64, tpu.core_type = #tpu.core_type<tc>, window_params = [{transform_indices = @transform_0, window_bounds = array<i64: 8, 512>}, {pipeline_mode = #tpu.pipeline_mode<synchronous>, transform_indices = @transform_1, window_bounds = array<i64: 9, 512>}, {pipeline_mode = #tpu.pipeline_mode<synchronous>, transform_indices = @transform_2, window_bounds = array<i64: 32, 72>}, {pipeline_mode = #tpu.pipeline_mode<synchronous>, transform_indices = @transform_3, window_bounds = array<i64: 32, 1>}, {pipeline_mode = #tpu.pipeline_mode<synchronous>, transform_indices = @transform_4, window_bounds = array<i64: 32, 288>}, {pipeline_mode = #tpu.pipeline_mode<synchronous>, transform_indices = @transform_5, window_bounds = array<i64: 32, 1>}, {pipeline_mode = #tpu.pipeline_mode<synchronous>, transform_indices = @transform_6, window_bounds = array<i64: 32, 288>}, {pipeline_mode = #tpu.pipeline_mode<synchronous>, transform_indices = @transform_7, window_bounds = array<i64: 32, 1>}, {transform_indices = @transform_8, window_bounds = array<i64: 1, 32, 2>}]} {
    %c0 = arith.constant 0 : index
    %c0_0 = arith.constant 0 : index
    %0 = vector.load %arg1[%c0, %c0_0] : memref<8x512xf32, #tpu.memory_space<vmem>>, vector<8x512xf32>
    %c17_i32 = arith.constant 17 : i32
    %1 = tpu.dynamic_rotate %0 by %c17_i32 dim 1 : vector<8x512xf32>, i32 -> vector<8x512xf32>
    %c0_1 = arith.constant 0 : index
    %c0_2 = arith.constant 0 : index
    %2 = vector.load %arg2[%c0_1, %c0_2] : memref<9x512xf32, #tpu.memory_space<vmem>>, vector<1x512xf32>
    %3 = vector.broadcast %2 : vector<1x512xf32> to vector<8x512xf32>
    %4 = arith.mulf %1, %3 : vector<8x512xf32>
    %c16_i32 = arith.constant 16 : i32
    %5 = tpu.dynamic_rotate %0 by %c16_i32 dim 1 : vector<8x512xf32>, i32 -> vector<8x512xf32>
    %c1 = arith.constant 1 : index
    %c0_3 = arith.constant 0 : index
    %6 = vector.load %arg2[%c1, %c0_3] : memref<9x512xf32, #tpu.memory_space<vmem>>, vector<1x512xf32>
    %7 = vector.broadcast %6 : vector<1x512xf32> to vector<8x512xf32>
    %8 = arith.mulf %5, %7 : vector<8x512xf32>
    %c15_i32 = arith.constant 15 : i32
    %9 = tpu.dynamic_rotate %0 by %c15_i32 dim 1 : vector<8x512xf32>, i32 -> vector<8x512xf32>
    %c2 = arith.constant 2 : index
    %c0_4 = arith.constant 0 : index
    %10 = vector.load %arg2[%c2, %c0_4] : memref<9x512xf32, #tpu.memory_space<vmem>>, vector<1x512xf32>
    %11 = vector.broadcast %10 : vector<1x512xf32> to vector<8x512xf32>
    %12 = arith.mulf %9, %11 : vector<8x512xf32>
    %c1_i32 = arith.constant 1 : i32
    %13 = tpu.dynamic_rotate %0 by %c1_i32 dim 1 : vector<8x512xf32>, i32 -> vector<8x512xf32>
    %c3 = arith.constant 3 : index
    %c0_5 = arith.constant 0 : index
    %14 = vector.load %arg2[%c3, %c0_5] : memref<9x512xf32, #tpu.memory_space<vmem>>, vector<1x512xf32>
    %15 = vector.broadcast %14 : vector<1x512xf32> to vector<8x512xf32>
    %16 = arith.mulf %13, %15 : vector<8x512xf32>
    %c511_i32 = arith.constant 511 : i32
    %17 = tpu.dynamic_rotate %0 by %c511_i32 dim 1 : vector<8x512xf32>, i32 -> vector<8x512xf32>
    %c5 = arith.constant 5 : index
    %c0_6 = arith.constant 0 : index
    %18 = vector.load %arg2[%c5, %c0_6] : memref<9x512xf32, #tpu.memory_space<vmem>>, vector<1x512xf32>
    %19 = vector.broadcast %18 : vector<1x512xf32> to vector<8x512xf32>
    %20 = arith.mulf %17, %19 : vector<8x512xf32>
    %c497_i32 = arith.constant 497 : i32
    %21 = tpu.dynamic_rotate %0 by %c497_i32 dim 1 : vector<8x512xf32>, i32 -> vector<8x512xf32>
    %c6 = arith.constant 6 : index
    %c0_7 = arith.constant 0 : index
    %22 = vector.load %arg2[%c6, %c0_7] : memref<9x512xf32, #tpu.memory_space<vmem>>, vector<1x512xf32>
    %23 = vector.broadcast %22 : vector<1x512xf32> to vector<8x512xf32>
    %24 = arith.mulf %21, %23 : vector<8x512xf32>
    %c496_i32 = arith.constant 496 : i32
    %25 = tpu.dynamic_rotate %0 by %c496_i32 dim 1 : vector<8x512xf32>, i32 -> vector<8x512xf32>
    %c7 = arith.constant 7 : index
    %c0_8 = arith.constant 0 : index
    %26 = vector.load %arg2[%c7, %c0_8] : memref<9x512xf32, #tpu.memory_space<vmem>>, vector<1x512xf32>
    %27 = vector.broadcast %26 : vector<1x512xf32> to vector<8x512xf32>
    %28 = arith.mulf %25, %27 : vector<8x512xf32>
    %c495_i32 = arith.constant 495 : i32
    %29 = tpu.dynamic_rotate %0 by %c495_i32 dim 1 : vector<8x512xf32>, i32 -> vector<8x512xf32>
    %c8 = arith.constant 8 : index
    %c0_9 = arith.constant 0 : index
    %30 = vector.load %arg2[%c8, %c0_9] : memref<9x512xf32, #tpu.memory_space<vmem>>, vector<1x512xf32>
    %31 = vector.broadcast %30 : vector<1x512xf32> to vector<8x512xf32>
    %32 = arith.mulf %29, %31 : vector<8x512xf32>
    %33 = tpu.concatenate %4, %8, %12, %16, %0, %20, %24, %28, %32 in 0 : vector<8x512xf32>, vector<8x512xf32>, vector<8x512xf32>, vector<8x512xf32>, vector<8x512xf32>, vector<8x512xf32>, vector<8x512xf32>, vector<8x512xf32>, vector<8x512xf32> -> vector<72x512xf32>
    %c0_10 = arith.constant 0 : index
    %c0_11 = arith.constant 0 : index
    %34 = vector.load %arg3[%c0_10, %c0_11] : memref<32x72xf32, #tpu.memory_space<vmem>>, vector<32x72xf32>
    %cst = arith.constant dense<0.000000e+00> : vector<32x512xf32>
    %35 = tpu.matmul %34, %33, %cst {dimension_numbers = #tpu.dot_dimension_numbers<[1], [0], [0], [1], [0, 0, 1, 1], [], []>} : vector<32x72xf32>, vector<72x512xf32>, vector<32x512xf32> -> vector<32x512xf32>
    %c0_12 = arith.constant 0 : index
    %c0_13 = arith.constant 0 : index
    %36 = vector.load %arg4[%c0_12, %c0_13] : memref<32x1xf32, #tpu.memory_space<vmem>>, vector<32x1xf32>
    %37 = vector.broadcast %36 : vector<32x1xf32> to vector<32x512xf32>
    %38 = arith.addf %35, %37 : vector<32x512xf32>
    %cst_14 = arith.constant 0.000000e+00 : f32
    %39 = vector.broadcast %cst_14 : f32 to vector<32x512xf32>
    %40 = arith.maximumf %38, %39 : vector<32x512xf32>
    %c17_i32_15 = arith.constant 17 : i32
    %41 = tpu.dynamic_rotate %40 by %c17_i32_15 dim 1 : vector<32x512xf32>, i32 -> vector<32x512xf32>
    %c0_16 = arith.constant 0 : index
    %c0_17 = arith.constant 0 : index
    %42 = vector.load %arg2[%c0_16, %c0_17] : memref<9x512xf32, #tpu.memory_space<vmem>>, vector<1x512xf32>
    %43 = vector.broadcast %42 : vector<1x512xf32> to vector<32x512xf32>
    %44 = arith.mulf %41, %43 : vector<32x512xf32>
    %c16_i32_18 = arith.constant 16 : i32
    %45 = tpu.dynamic_rotate %40 by %c16_i32_18 dim 1 : vector<32x512xf32>, i32 -> vector<32x512xf32>
    %c1_19 = arith.constant 1 : index
    %c0_20 = arith.constant 0 : index
    %46 = vector.load %arg2[%c1_19, %c0_20] : memref<9x512xf32, #tpu.memory_space<vmem>>, vector<1x512xf32>
    %47 = vector.broadcast %46 : vector<1x512xf32> to vector<32x512xf32>
    %48 = arith.mulf %45, %47 : vector<32x512xf32>
    %c15_i32_21 = arith.constant 15 : i32
    %49 = tpu.dynamic_rotate %40 by %c15_i32_21 dim 1 : vector<32x512xf32>, i32 -> vector<32x512xf32>
    %c2_22 = arith.constant 2 : index
    %c0_23 = arith.constant 0 : index
    %50 = vector.load %arg2[%c2_22, %c0_23] : memref<9x512xf32, #tpu.memory_space<vmem>>, vector<1x512xf32>
    %51 = vector.broadcast %50 : vector<1x512xf32> to vector<32x512xf32>
    %52 = arith.mulf %49, %51 : vector<32x512xf32>
    %c1_i32_24 = arith.constant 1 : i32
    %53 = tpu.dynamic_rotate %40 by %c1_i32_24 dim 1 : vector<32x512xf32>, i32 -> vector<32x512xf32>
    %c3_25 = arith.constant 3 : index
    %c0_26 = arith.constant 0 : index
    %54 = vector.load %arg2[%c3_25, %c0_26] : memref<9x512xf32, #tpu.memory_space<vmem>>, vector<1x512xf32>
    %55 = vector.broadcast %54 : vector<1x512xf32> to vector<32x512xf32>
    %56 = arith.mulf %53, %55 : vector<32x512xf32>
    %c511_i32_27 = arith.constant 511 : i32
    %57 = tpu.dynamic_rotate %40 by %c511_i32_27 dim 1 : vector<32x512xf32>, i32 -> vector<32x512xf32>
    %c5_28 = arith.constant 5 : index
    %c0_29 = arith.constant 0 : index
    %58 = vector.load %arg2[%c5_28, %c0_29] : memref<9x512xf32, #tpu.memory_space<vmem>>, vector<1x512xf32>
    %59 = vector.broadcast %58 : vector<1x512xf32> to vector<32x512xf32>
    %60 = arith.mulf %57, %59 : vector<32x512xf32>
    %c497_i32_30 = arith.constant 497 : i32
    %61 = tpu.dynamic_rotate %40 by %c497_i32_30 dim 1 : vector<32x512xf32>, i32 -> vector<32x512xf32>
    %c6_31 = arith.constant 6 : index
    %c0_32 = arith.constant 0 : index
    %62 = vector.load %arg2[%c6_31, %c0_32] : memref<9x512xf32, #tpu.memory_space<vmem>>, vector<1x512xf32>
    %63 = vector.broadcast %62 : vector<1x512xf32> to vector<32x512xf32>
    %64 = arith.mulf %61, %63 : vector<32x512xf32>
    %c496_i32_33 = arith.constant 496 : i32
    %65 = tpu.dynamic_rotate %40 by %c496_i32_33 dim 1 : vector<32x512xf32>, i32 -> vector<32x512xf32>
    %c7_34 = arith.constant 7 : index
    %c0_35 = arith.constant 0 : index
    %66 = vector.load %arg2[%c7_34, %c0_35] : memref<9x512xf32, #tpu.memory_space<vmem>>, vector<1x512xf32>
    %67 = vector.broadcast %66 : vector<1x512xf32> to vector<32x512xf32>
    %68 = arith.mulf %65, %67 : vector<32x512xf32>
    %c495_i32_36 = arith.constant 495 : i32
    %69 = tpu.dynamic_rotate %40 by %c495_i32_36 dim 1 : vector<32x512xf32>, i32 -> vector<32x512xf32>
    %c8_37 = arith.constant 8 : index
    %c0_38 = arith.constant 0 : index
    %70 = vector.load %arg2[%c8_37, %c0_38] : memref<9x512xf32, #tpu.memory_space<vmem>>, vector<1x512xf32>
    %71 = vector.broadcast %70 : vector<1x512xf32> to vector<32x512xf32>
    %72 = arith.mulf %69, %71 : vector<32x512xf32>
    %73 = tpu.concatenate %44, %48, %52, %56, %40, %60, %64, %68, %72 in 0 : vector<32x512xf32>, vector<32x512xf32>, vector<32x512xf32>, vector<32x512xf32>, vector<32x512xf32>, vector<32x512xf32>, vector<32x512xf32>, vector<32x512xf32>, vector<32x512xf32> -> vector<288x512xf32>
    %c0_39 = arith.constant 0 : index
    %c0_40 = arith.constant 0 : index
    %74 = vector.load %arg5[%c0_39, %c0_40] : memref<32x288xf32, #tpu.memory_space<vmem>>, vector<32x288xf32>
    %cst_41 = arith.constant dense<0.000000e+00> : vector<32x512xf32>
    %75 = tpu.matmul %74, %73, %cst_41 {dimension_numbers = #tpu.dot_dimension_numbers<[1], [0], [0], [1], [0, 0, 1, 1], [], []>} : vector<32x288xf32>, vector<288x512xf32>, vector<32x512xf32> -> vector<32x512xf32>
    %c0_42 = arith.constant 0 : index
    %c0_43 = arith.constant 0 : index
    %76 = vector.load %arg6[%c0_42, %c0_43] : memref<32x1xf32, #tpu.memory_space<vmem>>, vector<32x1xf32>
    %77 = vector.broadcast %76 : vector<32x1xf32> to vector<32x512xf32>
    %78 = arith.addf %75, %77 : vector<32x512xf32>
    %cst_44 = arith.constant 0.000000e+00 : f32
    %79 = vector.broadcast %cst_44 : f32 to vector<32x512xf32>
    %80 = arith.maximumf %78, %79 : vector<32x512xf32>
    %c17_i32_45 = arith.constant 17 : i32
    %81 = tpu.dynamic_rotate %80 by %c17_i32_45 dim 1 : vector<32x512xf32>, i32 -> vector<32x512xf32>
    %c0_46 = arith.constant 0 : index
    %c0_47 = arith.constant 0 : index
    %82 = vector.load %arg2[%c0_46, %c0_47] : memref<9x512xf32, #tpu.memory_space<vmem>>, vector<1x512xf32>
    %83 = vector.broadcast %82 : vector<1x512xf32> to vector<32x512xf32>
    %84 = arith.mulf %81, %83 : vector<32x512xf32>
    %c16_i32_48 = arith.constant 16 : i32
    %85 = tpu.dynamic_rotate %80 by %c16_i32_48 dim 1 : vector<32x512xf32>, i32 -> vector<32x512xf32>
    %c1_49 = arith.constant 1 : index
    %c0_50 = arith.constant 0 : index
    %86 = vector.load %arg2[%c1_49, %c0_50] : memref<9x512xf32, #tpu.memory_space<vmem>>, vector<1x512xf32>
    %87 = vector.broadcast %86 : vector<1x512xf32> to vector<32x512xf32>
    %88 = arith.mulf %85, %87 : vector<32x512xf32>
    %c15_i32_51 = arith.constant 15 : i32
    %89 = tpu.dynamic_rotate %80 by %c15_i32_51 dim 1 : vector<32x512xf32>, i32 -> vector<32x512xf32>
    %c2_52 = arith.constant 2 : index
    %c0_53 = arith.constant 0 : index
    %90 = vector.load %arg2[%c2_52, %c0_53] : memref<9x512xf32, #tpu.memory_space<vmem>>, vector<1x512xf32>
    %91 = vector.broadcast %90 : vector<1x512xf32> to vector<32x512xf32>
    %92 = arith.mulf %89, %91 : vector<32x512xf32>
    %c1_i32_54 = arith.constant 1 : i32
    %93 = tpu.dynamic_rotate %80 by %c1_i32_54 dim 1 : vector<32x512xf32>, i32 -> vector<32x512xf32>
    %c3_55 = arith.constant 3 : index
    %c0_56 = arith.constant 0 : index
    %94 = vector.load %arg2[%c3_55, %c0_56] : memref<9x512xf32, #tpu.memory_space<vmem>>, vector<1x512xf32>
    %95 = vector.broadcast %94 : vector<1x512xf32> to vector<32x512xf32>
    %96 = arith.mulf %93, %95 : vector<32x512xf32>
    %c511_i32_57 = arith.constant 511 : i32
    %97 = tpu.dynamic_rotate %80 by %c511_i32_57 dim 1 : vector<32x512xf32>, i32 -> vector<32x512xf32>
    %c5_58 = arith.constant 5 : index
    %c0_59 = arith.constant 0 : index
    %98 = vector.load %arg2[%c5_58, %c0_59] : memref<9x512xf32, #tpu.memory_space<vmem>>, vector<1x512xf32>
    %99 = vector.broadcast %98 : vector<1x512xf32> to vector<32x512xf32>
    %100 = arith.mulf %97, %99 : vector<32x512xf32>
    %c497_i32_60 = arith.constant 497 : i32
    %101 = tpu.dynamic_rotate %80 by %c497_i32_60 dim 1 : vector<32x512xf32>, i32 -> vector<32x512xf32>
    %c6_61 = arith.constant 6 : index
    %c0_62 = arith.constant 0 : index
    %102 = vector.load %arg2[%c6_61, %c0_62] : memref<9x512xf32, #tpu.memory_space<vmem>>, vector<1x512xf32>
    %103 = vector.broadcast %102 : vector<1x512xf32> to vector<32x512xf32>
    %104 = arith.mulf %101, %103 : vector<32x512xf32>
    %c496_i32_63 = arith.constant 496 : i32
    %105 = tpu.dynamic_rotate %80 by %c496_i32_63 dim 1 : vector<32x512xf32>, i32 -> vector<32x512xf32>
    %c7_64 = arith.constant 7 : index
    %c0_65 = arith.constant 0 : index
    %106 = vector.load %arg2[%c7_64, %c0_65] : memref<9x512xf32, #tpu.memory_space<vmem>>, vector<1x512xf32>
    %107 = vector.broadcast %106 : vector<1x512xf32> to vector<32x512xf32>
    %108 = arith.mulf %105, %107 : vector<32x512xf32>
    %c495_i32_66 = arith.constant 495 : i32
    %109 = tpu.dynamic_rotate %80 by %c495_i32_66 dim 1 : vector<32x512xf32>, i32 -> vector<32x512xf32>
    %c8_67 = arith.constant 8 : index
    %c0_68 = arith.constant 0 : index
    %110 = vector.load %arg2[%c8_67, %c0_68] : memref<9x512xf32, #tpu.memory_space<vmem>>, vector<1x512xf32>
    %111 = vector.broadcast %110 : vector<1x512xf32> to vector<32x512xf32>
    %112 = arith.mulf %109, %111 : vector<32x512xf32>
    %113 = tpu.concatenate %84, %88, %92, %96, %80, %100, %104, %108, %112 in 0 : vector<32x512xf32>, vector<32x512xf32>, vector<32x512xf32>, vector<32x512xf32>, vector<32x512xf32>, vector<32x512xf32>, vector<32x512xf32>, vector<32x512xf32>, vector<32x512xf32> -> vector<288x512xf32>
    %c0_69 = arith.constant 0 : index
    %c0_70 = arith.constant 0 : index
    %114 = vector.load %arg7[%c0_69, %c0_70] : memref<32x288xf32, #tpu.memory_space<vmem>>, vector<32x288xf32>
    %cst_71 = arith.constant dense<0.000000e+00> : vector<32x512xf32>
    %115 = tpu.matmul %114, %113, %cst_71 {dimension_numbers = #tpu.dot_dimension_numbers<[1], [0], [0], [1], [0, 0, 1, 1], [], []>} : vector<32x288xf32>, vector<288x512xf32>, vector<32x512xf32> -> vector<32x512xf32>
    %c0_72 = arith.constant 0 : index
    %c0_73 = arith.constant 0 : index
    %116 = vector.load %arg8[%c0_72, %c0_73] : memref<32x1xf32, #tpu.memory_space<vmem>>, vector<32x1xf32>
    %117 = vector.broadcast %116 : vector<32x1xf32> to vector<32x512xf32>
    %118 = arith.addf %115, %117 : vector<32x512xf32>
    %119 = arith.addf %118, %40 : vector<32x512xf32>
    %cst_74 = arith.constant 0.000000e+00 : f32
    %120 = vector.broadcast %cst_74 : f32 to vector<32x512xf32>
    %121 = arith.maximumf %119, %120 : vector<32x512xf32>
    %122 = tpu.iota {dimensions = array<i32: 1>} : vector<32x2xi32>
    %cst_75 = arith.constant 0.000000e+00 : f32
    %123 = vector.broadcast %cst_75 : f32 to vector<32x2xf32>
    %124 = vector.extract_strided_slice %121 {offsets = [0, 0], sizes = [32, 256], strides = [1, 1]} : vector<32x512xf32> to vector<32x256xf32>
    %cst_76 = arith.constant dense<0.000000e+00> : vector<32xf32>
    %125 = vector.multi_reduction <add>, %124, %cst_76 [1] : vector<32x256xf32> to vector<32xf32>
    %126 = vector.shape_cast %125 : vector<32xf32> to vector<32x1xf32>
    %cst_77 = arith.constant 2.560000e+02 : f32
    %127 = vector.broadcast %cst_77 : f32 to vector<32x1xf32>
    %128 = arith.divf %126, %127 : vector<32x1xf32>
    %c0_i32 = arith.constant 0 : i32
    %129 = vector.broadcast %c0_i32 : i32 to vector<32x2xi32>
    %130 = arith.cmpi eq, %122, %129 : vector<32x2xi32>
    %131 = vector.shape_cast %128 : vector<32x1xf32> to vector<32x1xf32>
    %132 = vector.broadcast %131 : vector<32x1xf32> to vector<32x2xf32>
    %133 = arith.select %130, %132, %123 : vector<32x2xi1>, vector<32x2xf32>
    %134 = vector.extract_strided_slice %121 {offsets = [0, 256], sizes = [32, 256], strides = [1, 1]} : vector<32x512xf32> to vector<32x256xf32>
    %cst_78 = arith.constant dense<0.000000e+00> : vector<32xf32>
    %135 = vector.multi_reduction <add>, %134, %cst_78 [1] : vector<32x256xf32> to vector<32xf32>
    %136 = vector.shape_cast %135 : vector<32xf32> to vector<32x1xf32>
    %cst_79 = arith.constant 2.560000e+02 : f32
    %137 = vector.broadcast %cst_79 : f32 to vector<32x1xf32>
    %138 = arith.divf %136, %137 : vector<32x1xf32>
    %c1_i32_80 = arith.constant 1 : i32
    %139 = vector.broadcast %c1_i32_80 : i32 to vector<32x2xi32>
    %140 = arith.cmpi eq, %122, %139 : vector<32x2xi32>
    %141 = vector.shape_cast %138 : vector<32x1xf32> to vector<32x1xf32>
    %142 = vector.broadcast %141 : vector<32x1xf32> to vector<32x2xf32>
    %143 = arith.select %140, %142, %133 : vector<32x2xi1>, vector<32x2xf32>
    %144 = vector.shape_cast %143 : vector<32x2xf32> to vector<1x32x2xf32>
    %c0_81 = arith.constant 0 : index
    %c0_82 = arith.constant 0 : index
    %c0_83 = arith.constant 0 : index
    %145 = vector.load %arg9[%c0_81, %c0_82, %c0_83] : memref<1x32x2xf32, #tpu.memory_space<vmem>>, vector<1x32x2xf32>
    tpu.vector_store %arg9[%c0_81, %c0_82, %c0_83], %144 {strides = array<i32>} : memref<1x32x2xf32, #tpu.memory_space<vmem>>, vector<1x32x2xf32>,
    return
  }
  func.func @transform_0(%arg0: i32) -> (i32, i32) {
    %c0_i32 = arith.constant 0 : i32
    %c0_i32_0 = arith.constant 0 : i32
    return %c0_i32, %arg0 : i32, i32
  }
  func.func @transform_1(%arg0: i32) -> (i32, i32) {
    %c0_i32 = arith.constant 0 : i32
    %c0_i32_0 = arith.constant 0 : i32
    %c0_i32_1 = arith.constant 0 : i32
    return %c0_i32, %c0_i32_0 : i32, i32
  }
  func.func @transform_2(%arg0: i32) -> (i32, i32) {
    %c0_i32 = arith.constant 0 : i32
    %c0_i32_0 = arith.constant 0 : i32
    %c0_i32_1 = arith.constant 0 : i32
    return %c0_i32, %c0_i32_0 : i32, i32
  }
  func.func @transform_3(%arg0: i32) -> (i32, i32) {
    %c0_i32 = arith.constant 0 : i32
    %c0_i32_0 = arith.constant 0 : i32
    %c0_i32_1 = arith.constant 0 : i32
    return %c0_i32, %c0_i32_0 : i32, i32
  }
  func.func @transform_4(%arg0: i32) -> (i32, i32) {
    %c0_i32 = arith.constant 0 : i32
    %c0_i32_0 = arith.constant 0 : i32
    %c0_i32_1 = arith.constant 0 : i32
    return %c0_i32, %c0_i32_0 : i32, i32
  }
  func.func @transform_5(%arg0: i32) -> (i32, i32) {
    %c0_i32 = arith.constant 0 : i32
    %c0_i32_0 = arith.constant 0 : i32
    %c0_i32_1 = arith.constant 0 : i32
    return %c0_i32, %c0_i32_0 : i32, i32
  }
  func.func @transform_6(%arg0: i32) -> (i32, i32) {
    %c0_i32 = arith.constant 0 : i32
    %c0_i32_0 = arith.constant 0 : i32
    %c0_i32_1 = arith.constant 0 : i32
    return %c0_i32, %c0_i32_0 : i32, i32
  }
  func.func @transform_7(%arg0: i32) -> (i32, i32) {
    %c0_i32 = arith.constant 0 : i32
    %c0_i32_0 = arith.constant 0 : i32
    %c0_i32_1 = arith.constant 0 : i32
    return %c0_i32, %c0_i32_0 : i32, i32
  }
  func.func @transform_8(%arg0: i32) -> (i32, i32, i32) {
    %c0_i32 = arith.constant 0 : i32
    %c0_i32_0 = arith.constant 0 : i32
    %c0_i32_1 = arith.constant 0 : i32
    return %arg0, %c0_i32, %c0_i32_0 : i32, i32, i32
  }
}

</mosaic_0001>

<llo_original>
// kernel: encoder_forward.1
$region0: #{encoder_forward.1}
  #allocation0 [shape = 'u32[]', space=smem, size = 0x4, offset = 0x4, fixed_abs, tag = 'smem constant byte address 0x4 - core index']
  #allocation1 [shape = 'u32[72,128]{1,0:T(1,128)}', space=vmem, size = 0x9000, scoped, tag = 'internal scratch']
  %s0 = inlined_call_operand.vmem [shape: f32[8,512], index: 0, kind: input, shape index: {}]
  %s1 = inlined_call_operand.vmem [shape: f32[9,512], index: 1, kind: input, shape index: {}]
  %s2 = inlined_call_operand.vmem [shape: f32[32,72], index: 2, kind: input, shape index: {}]
  %s3 = inlined_call_operand.vmem [shape: f32[32,1], index: 3, kind: input, shape index: {}]
  %s4 = inlined_call_operand.vmem [shape: f32[32,288], index: 4, kind: input, shape index: {}]
  %s5 = inlined_call_operand.vmem [shape: f32[32,1], index: 5, kind: input, shape index: {}]
  %s6 = inlined_call_operand.vmem [shape: f32[32,288], index: 6, kind: input, shape index: {}]
  %s7 = inlined_call_operand.vmem [shape: f32[32,1], index: 7, kind: input, shape index: {}]
  %s8 = inlined_call_operand.vmem [shape: f32[1,32,2], index: 8, kind: output, shape index: {}]
  %s9 = sld [smem:[#allocation0]]
  $region42: #{encoder_forward.1} parent=0
    _
  %s11 = ssub.s32 1, %s9
  %s12 = scalar_select 0, %s11, %s9
  // Predicated region
  $region2: #{encoder_forward.1} parent=0 // pred_check
    _
  $region3: #{encoder_forward.1} parent=0 // pred_check_branch
    %14 = sbr.rel (0) target = $region5
  $region4: #{encoder_forward.1} parent=0 // pred_region
    _
  $region5: #{encoder_forward.1} parent=0 // pred_fallthru
    _
  // Predicated region
  $region6: #{encoder_forward.1} parent=0 // pred_check
    _
  $region7: #{encoder_forward.1} parent=0 // pred_check_branch
    %16 = sbr.rel (0) target = $region9
  $region8: #{encoder_forward.1} parent=0 // pred_region
    _
  $region9: #{encoder_forward.1} parent=0 // pred_fallthru
    _
  // Predicated region
  $region10: #{encoder_forward.1} parent=0 // pred_check
    _
  $region11: #{encoder_forward.1} parent=0 // pred_check_branch
    %18 = sbr.rel (0) target = $region13
  $region12: #{encoder_forward.1} parent=0 // pred_region
    _
  $region13: #{encoder_forward.1} parent=0 // pred_fallthru
    _
  // Predicated region
  $region14: #{encoder_forward.1} parent=0 // pred_check
    _
  $region15: #{encoder_forward.1} parent=0 // pred_check_branch
    %20 = sbr.rel (0) target = $region17
  $region16: #{encoder_forward.1} parent=0 // pred_region
    _
  $region17: #{encoder_forward.1} parent=0 // pred_fallthru
    _
  // Predicated region
  $region18: #{encoder_forward.1} parent=0 // pred_check
    _
  $region19: #{encoder_forward.1} parent=0 // pred_check_branch
    %22 = sbr.rel (0) target = $region21
  $region20: #{encoder_forward.1} parent=0 // pred_region
    _
  $region21: #{encoder_forward.1} parent=0 // pred_fallthru
    _
  // Predicated region
  $region22: #{encoder_forward.1} parent=0 // pred_check
    _
  $region23: #{encoder_forward.1} parent=0 // pred_check_branch
    %24 = sbr.rel (0) target = $region25
  $region24: #{encoder_forward.1} parent=0 // pred_region
    _
  $region25: #{encoder_forward.1} parent=0 // pred_fallthru
    _
  // Predicated region
  $region26: #{encoder_forward.1} parent=0 // pred_check
    _
  $region27: #{encoder_forward.1} parent=0 // pred_check_branch
    %26 = sbr.rel (0) target = $region29
  $region28: #{encoder_forward.1} parent=0 // pred_region
    _
  $region29: #{encoder_forward.1} parent=0 // pred_fallthru
    _
  // Predicated region
  $region30: #{encoder_forward.1} parent=0 // pred_check
    _
  $region31: #{encoder_forward.1} parent=0 // pred_check_branch
    %28 = sbr.rel (0) target = $region33
  $region32: #{encoder_forward.1} parent=0 // pred_region
    _
  $region33: #{encoder_forward.1} parent=0 // pred_fallthru
    _
  %v29 = vld [vmem:[%s0] sm:$0xff]
  %v30 = vld [vmem:[%s0 + $0x8] sm:$0xff]
  %v31 = vld [vmem:[%s0 + $0x10] sm:$0xff]
  %v32 = vld [vmem:[%s0 + $0x18] sm:$0xff]
  %33 = vrot.lane.b32.xlu0 %v29, 17
  %v34 = vpop.permute.xlu0 %33
  %35 = vrot.lane.b32.xlu0 %v30, 17
  %v36 = vpop.permute.xlu0 %35
  %37 = vrot.lane.b32.xlu0 %v31, 17
  %v38 = vpop.permute.xlu0 %37
  %39 = vrot.lane.b32.xlu0 %v32, 17
  %v40 = vpop.permute.xlu0 %39
  %v41 = vlaneseq
  %v42 = vand.u32 %v41, 127
  %vm43 = vcmp.lt.s32.totalorder %v42, 17
  %v44 = vsel %vm43, %v38, %v40
  %v45 = vsel %vm43, %v36, %v38
  %v46 = vsel %vm43, %v34, %v36
  %v47 = vsel %vm43, %v40, %v34
  %v48 = vld [vmem:[%s1] ss:$8 sm:$0xf]
  %v50 = vperm.slane %v48, 0
  %v51 = vperm.slane %v48, 1
  %v52 = vperm.slane %v48, 2
  %v53 = vperm.slane %v48, 3
  %v58 = vmul.f32 %v47, %v50
  %v59 = vmul.f32 %v46, %v51
  %v60 = vmul.f32 %v45, %v52
  %v61 = vmul.f32 %v44, %v53
  %62 = vrot.lane.b32.xlu0 %v29, 16
  %v63 = vpop.permute.xlu0 %62
  %64 = vrot.lane.b32.xlu0 %v30, 16
  %v65 = vpop.permute.xlu0 %64
  %66 = vrot.lane.b32.xlu0 %v31, 16
  %v67 = vpop.permute.xlu0 %66
  %68 = vrot.lane.b32.xlu0 %v32, 16
  %v69 = vpop.permute.xlu0 %68
  %vm70 = vcmp.lt.s32.totalorder %v42, 16
  %v71 = vsel %vm70, %v67, %v69
  %v72 = vsel %vm70, %v65, %v67
  %v73 = vsel %vm70, %v63, %v65
  %v74 = vsel %vm70, %v69, %v63
  %s75 = scalar_lea.vmem %s1, 1
  %v76 = vld [vmem:[%s75] ss:$8 sm:$0xf]
  %v78 = vperm.slane %v76, 0
  %v79 = vperm.slane %v76, 1
  %v80 = vperm.slane %v76, 2
  %v81 = vperm.slane %v76, 3
  %v86 = vmul.f32 %v74, %v78
  %v87 = vmul.f32 %v73, %v79
  %v88 = vmul.f32 %v72, %v80
  %v89 = vmul.f32 %v71, %v81
  %90 = vrot.lane.b32.xlu0 %v29, 15
  %v91 = vpop.permute.xlu0 %90
  %92 = vrot.lane.b32.xlu0 %v30, 15
  %v93 = vpop.permute.xlu0 %92
  %94 = vrot.lane.b32.xlu0 %v31, 15
  %v95 = vpop.permute.xlu0 %94
  %96 = vrot.lane.b32.xlu0 %v32, 15
  %v97 = vpop.permute.xlu0 %96
  %vm98 = vcmp.lt.s32.totalorder %v42, 15
  %v99 = vsel %vm98, %v95, %v97
  %v100 = vsel %vm98, %v93, %v95
  %v101 = vsel %vm98, %v91, %v93
  %v102 = vsel %vm98, %v97, %v91
  %s103 = scalar_lea.vmem %s1, 2
  %v104 = vld [vmem:[%s103] ss:$8 sm:$0xf]
  %v106 = vperm.slane %v104, 0
  %v107 = vperm.slane %v104, 1
  %v108 = vperm.slane %v104, 2
  %v109 = vperm.slane %v104, 3
  %v114 = vmul.f32 %v102, %v106
  %v115 = vmul.f32 %v101, %v107
  %v116 = vmul.f32 %v100, %v108
  %v117 = vmul.f32 %v99, %v109
  %118 = vrot.lane.b32.xlu0 %v29, 1
  %v119 = vpop.permute.xlu0 %118
  %120 = vrot.lane.b32.xlu0 %v30, 1
  %v121 = vpop.permute.xlu0 %120
  %122 = vrot.lane.b32.xlu0 %v31, 1
  %v123 = vpop.permute.xlu0 %122
  %124 = vrot.lane.b32.xlu0 %v32, 1
  %v125 = vpop.permute.xlu0 %124
  %vm126 = vcmp.lt.s32.totalorder %v42, 1
  %v127 = vsel %vm126, %v123, %v125
  %v128 = vsel %vm126, %v121, %v123
  %v129 = vsel %vm126, %v119, %v121
  %v130 = vsel %vm126, %v125, %v119
  %s131 = scalar_lea.vmem %s1, 3
  %v132 = vld [vmem:[%s131] ss:$8 sm:$0xf]
  %v134 = vperm.slane %v132, 0
  %v135 = vperm.slane %v132, 1
  %v136 = vperm.slane %v132, 2
  %v137 = vperm.slane %v132, 3
  %v142 = vmul.f32 %v130, %v134
  %v143 = vmul.f32 %v129, %v135
  %v144 = vmul.f32 %v128, %v136
  %v145 = vmul.f32 %v127, %v137
  %146 = vrot.lane.b32.xlu0 %v29, 127
  %v147 = vpop.permute.xlu0 %146
  %148 = vrot.lane.b32.xlu0 %v30, 127
  %v149 = vpop.permute.xlu0 %148
  %150 = vrot.lane.b32.xlu0 %v31, 127
  %v151 = vpop.permute.xlu0 %150
  %152 = vrot.lane.b32.xlu0 %v32, 127
  %v153 = vpop.permute.xlu0 %152
  %vm154 = vcmp.lt.s32.totalorder %v42, 127
  %v155 = vsel %vm154, %v151, %v153
  %v156 = vsel %vm154, %v149, %v151
  %v157 = vsel %vm154, %v147, %v149
  %v158 = vsel %vm154, %v153, %v147
  %s159 = scalar_lea.vmem %s1, 5
  %v160 = vld [vmem:[%s159] ss:$8 sm:$0xf]
  %v162 = vperm.slane %v160, 0
  %v163 = vperm.slane %v160, 1
  %v164 = vperm.slane %v160, 2
  %v165 = vperm.slane %v160, 3
  %v170 = vmul.f32 %v157, %v162
  %v171 = vmul.f32 %v156, %v163
  %v172 = vmul.f32 %v155, %v164
  %v173 = vmul.f32 %v158, %v165
  %174 = vrot.lane.b32.xlu0 %v29, 113
  %v175 = vpop.permute.xlu0 %174
  %176 = vrot.lane.b32.xlu0 %v30, 113
  %v177 = vpop.permute.xlu0 %176
  %178 = vrot.lane.b32.xlu0 %v31, 113
  %v179 = vpop.permute.xlu0 %178
  %180 = vrot.lane.b32.xlu0 %v32, 113
  %v181 = vpop.permute.xlu0 %180
  %vm182 = vcmp.lt.s32.totalorder %v42, 113
  %v183 = vsel %vm182, %v179, %v181
  %v184 = vsel %vm182, %v177, %v179
  %v185 = vsel %vm182, %v175, %v177
  %v186 = vsel %vm182, %v181, %v175
  %s187 = scalar_lea.vmem %s1, 6
  %v188 = vld [vmem:[%s187] ss:$8 sm:$0xf]
  %v190 = vperm.slane %v188, 0
  %v191 = vperm.slane %v188, 1
  %v192 = vperm.slane %v188, 2
  %v193 = vperm.slane %v188, 3
  %v198 = vmul.f32 %v185, %v190
  %v199 = vmul.f32 %v184, %v191
  %v200 = vmul.f32 %v183, %v192
  %v201 = vmul.f32 %v186, %v193
  %202 = vrot.lane.b32.xlu0 %v29, 112
  %v203 = vpop.permute.xlu0 %202
  %204 = vrot.lane.b32.xlu0 %v30, 112
  %v205 = vpop.permute.xlu0 %204
  %206 = vrot.lane.b32.xlu0 %v31, 112
  %v207 = vpop.permute.xlu0 %206
  %208 = vrot.lane.b32.xlu0 %v32, 112
  %v209 = vpop.permute.xlu0 %208
  %vm210 = vcmp.lt.s32.totalorder %v42, 112
  %v211 = vsel %vm210, %v207, %v209
  %v212 = vsel %vm210, %v205, %v207
  %v213 = vsel %vm210, %v203, %v205
  %v214 = vsel %vm210, %v209, %v203
  %s215 = scalar_lea.vmem %s1, 7
  %v216 = vld [vmem:[%s215] ss:$8 sm:$0xf]
  %v218 = vperm.slane %v216, 0
  %v219 = vperm.slane %v216, 1
  %v220 = vperm.slane %v216, 2
  %v221 = vperm.slane %v216, 3
  %v226 = vmul.f32 %v213, %v218
  %v227 = vmul.f32 %v212, %v219
  %v228 = vmul.f32 %v211, %v220
  %v229 = vmul.f32 %v214, %v221
  %230 = vrot.lane.b32.xlu0 %v29, 111
  %v231 = vpop.permute.xlu0 %230
  %232 = vrot.lane.b32.xlu0 %v30, 111
  %v233 = vpop.permute.xlu0 %232
  %234 = vrot.lane.b32.xlu0 %v31, 111
  %v235 = vpop.permute.xlu0 %234
  %236 = vrot.lane.b32.xlu0 %v32, 111
  %v237 = vpop.permute.xlu0 %236
  %vm238 = vcmp.lt.s32.totalorder %v42, 111
  %v239 = vsel %vm238, %v235, %v237
  %v240 = vsel %vm238, %v233, %v235
  %v241 = vsel %vm238, %v231, %v233
  %v242 = vsel %vm238, %v237, %v231
  %s243 = scalar_lea.vmem %s1, 32
  %v244 = vld [vmem:[%s243] ss:$8 sm:$0xf]
  %v246 = vperm.slane %v244, 0
  %v247 = vperm.slane %v244, 1
  %v248 = vperm.slane %v244, 2
  %v249 = vperm.slane %v244, 3
  %v254 = vmul.f32 %v241, %v246
  %v255 = vmul.f32 %v240, %v247
  %v256 = vmul.f32 %v239, %v248
  %v257 = vmul.f32 %v242, %v249
  %v258 = vld [vmem:[%s2] sm:$0xff]
  %v259 = vld [vmem:[%s2 + $0x8] sm:$0xff]
  %v260 = vld [vmem:[%s2 + $0x10] sm:$0xff]
  %v261 = vld [vmem:[%s2 + $0x18] sm:$0xff]
  %v262 = vld [vmem:[%s3] sm:$0xff]
  %v263 = vld [vmem:[%s3 + $0x8] sm:$0xff]
  %v264 = vld [vmem:[%s3 + $0x10] sm:$0xff]
  %v265 = vld [vmem:[%s3 + $0x18] sm:$0xff]
  %267 = vset.pattern.permute.xlu0 0
  %268 = vperm.xlu0 %267, %v262
  %v269 = vpop.permute.xlu0 %268
  %272 = vset.pattern.permute.xlu0 0
  %273 = vperm.xlu0 %272, %v263
  %v274 = vpop.permute.xlu0 %273
  %277 = vset.pattern.permute.xlu0 0
  %278 = vperm.xlu0 %277, %v264
  %v279 = vpop.permute.xlu0 %278
  %282 = vset.pattern.permute.xlu0 0
  %283 = vperm.xlu0 %282, %v265
  %v284 = vpop.permute.xlu0 %283
  %vm286 = vcmask 588800
  %v288 = vsel %vm286, %v258, 0
  %v291 = vsel %vm286, %v259, 0
  %v294 = vsel %vm286, %v260, 0
  %v297 = vsel %vm286, %v261, 0
  %299 = vmatpush.msra.mxu0 0.0
  %300 = vmatpush.msra.mxu0 0.0
  %301 = vmatpush.msra.mxu0 0.0
  %302 = vmatpush.msra.mxu0 0.0
  %303 = vmatpush.msra.mxu0 0.0
  %304 = vmatpush.msra.mxu0 0.0
  %305 = vmatpush.msra.mxu0 0.0
  %306 = vmatpush.msra.mxu0 %v254
  %307 = vmatpush.msra.mxu0 %v226
  %308 = vmatpush.msra.mxu0 %v198
  %309 = vmatpush.msra.mxu0 %v170
  %310 = vmatpush.msra.mxu0 %v29
  %311 = vmatpush.msra.mxu0 %v142
  %312 = vmatpush.msra.mxu0 %v114
  %313 = vmatpush.msra.mxu0 %v86
  %314 = vmatpush.msra.mxu0 %v58
  %315 = vmatmul.f32.gmra.mxu0 %v288
  %v316 = vpop.f32.mrf.mxu0
  %v317 = vadd.f32 %v269, %v316
  %318 = vmatmul.f32.gmra.mxu0 %v291
  %v319 = vpop.f32.mrf.mxu0
  %v320 = vadd.f32 %v274, %v319
  %321 = vmatmul.f32.gmra.mxu0 %v294
  %v322 = vpop.f32.mrf.mxu0
  %v323 = vadd.f32 %v279, %v322
  %324 = vmatmul.f32.gmra.mxu0 %v297
  %v325 = vpop.f32.mrf.mxu0
  %v326 = vadd.f32 %v284, %v325
  %327 = vdwg.mxu0
  %328 = vmatpush.msra.mxu0 0.0
  %329 = vmatpush.msra.mxu0 0.0
  %330 = vmatpush.msra.mxu0 0.0
  %331 = vmatpush.msra.mxu0 0.0
  %332 = vmatpush.msra.mxu0 0.0
  %333 = vmatpush.msra.mxu0 0.0
  %334 = vmatpush.msra.mxu0 0.0
  %335 = vmatpush.msra.mxu0 %v255
  %336 = vmatpush.msra.mxu0 %v227
  %337 = vmatpush.msra.mxu0 %v199
  %338 = vmatpush.msra.mxu0 %v171
  %339 = vmatpush.msra.mxu0 %v30
  %340 = vmatpush.msra.mxu0 %v143
  %341 = vmatpush.msra.mxu0 %v115
  %342 = vmatpush.msra.mxu0 %v87
  %343 = vmatpush.msra.mxu0 %v59
  %344 = vmatmul.f32.gmra.mxu0 %v288
  %v345 = vpop.f32.mrf.mxu0
  %v346 = vadd.f32 %v269, %v345
  %347 = vmatmul.f32.gmra.mxu0 %v291
  %v348 = vpop.f32.mrf.mxu0
  %v349 = vadd.f32 %v274, %v348
  %350 = vmatmul.f32.gmra.mxu0 %v294
  %v351 = vpop.f32.mrf.mxu0
  %v352 = vadd.f32 %v279, %v351
  %353 = vmatmul.f32.gmra.mxu0 %v297
  %v354 = vpop.f32.mrf.mxu0
  %v355 = vadd.f32 %v284, %v354
  %356 = vdwg.mxu0
  %357 = vmatpush.msra.mxu0 0.0
  %358 = vmatpush.msra.mxu0 0.0
  %359 = vmatpush.msra.mxu0 0.0
  %360 = vmatpush.msra.mxu0 0.0
  %361 = vmatpush.msra.mxu0 0.0
  %362 = vmatpush.msra.mxu0 0.0
  %363 = vmatpush.msra.mxu0 0.0
  %364 = vmatpush.msra.mxu0 %v256
  %365 = vmatpush.msra.mxu0 %v228
  %366 = vmatpush.msra.mxu0 %v200
  %367 = vmatpush.msra.mxu0 %v172
  %368 = vmatpush.msra.mxu0 %v31
  %369 = vmatpush.msra.mxu0 %v144
  %370 = vmatpush.msra.mxu0 %v116
  %371 = vmatpush.msra.mxu0 %v88
  %372 = vmatpush.msra.mxu0 %v60
  %373 = vmatmul.f32.gmra.mxu0 %v288
  %v374 = vpop.f32.mrf.mxu0
  %v375 = vadd.f32 %v269, %v374
  %376 = vmatmul.f32.gmra.mxu0 %v291
  %v377 = vpop.f32.mrf.mxu0
  %v378 = vadd.f32 %v274, %v377
  %379 = vmatmul.f32.gmra.mxu0 %v294
  %v380 = vpop.f32.mrf.mxu0
  %v381 = vadd.f32 %v279, %v380
  %382 = vmatmul.f32.gmra.mxu0 %v297
  %v383 = vpop.f32.mrf.mxu0
  %v384 = vadd.f32 %v284, %v383
  %385 = vdwg.mxu0
  %386 = vmatpush.msra.mxu0 0.0
  %387 = vmatpush.msra.mxu0 0.0
  %388 = vmatpush.msra.mxu0 0.0
  %389 = vmatpush.msra.mxu0 0.0
  %390 = vmatpush.msra.mxu0 0.0
  %391 = vmatpush.msra.mxu0 0.0
  %392 = vmatpush.msra.mxu0 0.0
  %393 = vmatpush.msra.mxu0 %v257
  %394 = vmatpush.msra.mxu0 %v229
  %395 = vmatpush.msra.mxu0 %v201
  %396 = vmatpush.msra.mxu0 %v173
  %397 = vmatpush.msra.mxu0 %v32
  %398 = vmatpush.msra.mxu0 %v145
  %399 = vmatpush.msra.mxu0 %v117
  %400 = vmatpush.msra.mxu0 %v89
  %401 = vmatpush.msra.mxu0 %v61
  %402 = vmatmul.f32.gmra.mxu0 %v288
  %v403 = vpop.f32.mrf.mxu0
  %v404 = vadd.f32 %v269, %v403
  %405 = vmatmul.f32.gmra.mxu0 %v291
  %v406 = vpop.f32.mrf.mxu0
  %v407 = vadd.f32 %v274, %v406
  %408 = vmatmul.f32.gmra.mxu0 %v294
  %v409 = vpop.f32.mrf.mxu0
  %v410 = vadd.f32 %v279, %v409
  %411 = vmatmul.f32.gmra.mxu0 %v297
  %v412 = vpop.f32.mrf.mxu0
  %v413 = vadd.f32 %v284, %v412
  %414 = vdwg.mxu0
  %v415 = vmax.f32 %v317, 0.0
  %v416 = vmax.f32 %v346, 0.0
  %v417 = vmax.f32 %v375, 0.0
  %v418 = vmax.f32 %v404, 0.0
  %v419 = vmax.f32 %v320, 0.0
  %v420 = vmax.f32 %v349, 0.0
  %v421 = vmax.f32 %v378, 0.0
  %v422 = vmax.f32 %v407, 0.0
  %v423 = vmax.f32 %v323, 0.0
  %v424 = vmax.f32 %v352, 0.0
  %v425 = vmax.f32 %v381, 0.0
  %v426 = vmax.f32 %v410, 0.0
  %v427 = vmax.f32 %v326, 0.0
  %v428 = vmax.f32 %v355, 0.0
  %v429 = vmax.f32 %v384, 0.0
  %v430 = vmax.f32 %v413, 0.0
  %431 = vrot.lane.b32.xlu0 %v415, 17
  %v432 = vpop.permute.xlu0 %431
  %433 = vrot.lane.b32.xlu0 %v419, 17
  %v434 = vpop.permute.xlu0 %433
  %435 = vrot.lane.b32.xlu0 %v423, 17
  %v436 = vpop.permute.xlu0 %435
  %437 = vrot.lane.b32.xlu0 %v427, 17
  %v438 = vpop.permute.xlu0 %437
  %439 = vrot.lane.b32.xlu0 %v416, 17
  %v440 = vpop.permute.xlu0 %439
  %441 = vrot.lane.b32.xlu0 %v420, 17
  %v442 = vpop.permute.xlu0 %441
  %443 = vrot.lane.b32.xlu0 %v424, 17
  %v444 = vpop.permute.xlu0 %443
  %445 = vrot.lane.b32.xlu0 %v428, 17
  %v446 = vpop.permute.xlu0 %445
  %447 = vrot.lane.b32.xlu0 %v417, 17
  %v448 = vpop.permute.xlu0 %447
  %449 = vrot.lane.b32.xlu0 %v421, 17
  %v450 = vpop.permute.xlu0 %449
  %451 = vrot.lane.b32.xlu0 %v425, 17
  %v452 = vpop.permute.xlu0 %451
  %453 = vrot.lane.b32.xlu0 %v429, 17
  %v454 = vpop.permute.xlu0 %453
  %455 = vrot.lane.b32.xlu0 %v418, 17
  %v456 = vpop.permute.xlu0 %455
  %457 = vrot.lane.b32.xlu0 %v422, 17
  %v458 = vpop.permute.xlu0 %457
  %459 = vrot.lane.b32.xlu0 %v426, 17
  %v460 = vpop.permute.xlu0 %459
  %461 = vrot.lane.b32.xlu0 %v430, 17
  %v462 = vpop.permute.xlu0 %461
  %v463 = vsel %vm43, %v448, %v456
  %v464 = vsel %vm43, %v450, %v458
  %v465 = vsel %vm43, %v452, %v460
  %v466 = vsel %vm43, %v454, %v462
  %v467 = vsel %vm43, %v440, %v448
  %v468 = vsel %vm43, %v442, %v450
  %v469 = vsel %vm43, %v444, %v452
  %v470 = vsel %vm43, %v446, %v454
  %v471 = vsel %vm43, %v432, %v440
  %v472 = vsel %vm43, %v434, %v442
  %v473 = vsel %vm43, %v436, %v444
  %v474 = vsel %vm43, %v438, %v446
  %v475 = vsel %vm43, %v456, %v432
  %v476 = vsel %vm43, %v458, %v434
  %v477 = vsel %vm43, %v460, %v436
  %v478 = vsel %vm43, %v462, %v438
  %v479 = vmul.f32 %v475, %v50
  %v480 = vmul.f32 %v471, %v51
  %v481 = vmul.f32 %v467, %v52
  %v482 = vmul.f32 %v463, %v53
  %v483 = vmul.f32 %v476, %v50
  %v484 = vmul.f32 %v472, %v51
  %v485 = vmul.f32 %v468, %v52
  %v486 = vmul.f32 %v464, %v53
  %v487 = vmul.f32 %v477, %v50
  %v488 = vmul.f32 %v473, %v51
  %v489 = vmul.f32 %v469, %v52
  %v490 = vmul.f32 %v465, %v53
  %v491 = vmul.f32 %v478, %v50
  %v492 = vmul.f32 %v474, %v51
  %v493 = vmul.f32 %v470, %v52
  %v494 = vmul.f32 %v466, %v53
  %495 = vrot.lane.b32.xlu0 %v415, 16
  %v496 = vpop.permute.xlu0 %495
  %497 = vrot.lane.b32.xlu0 %v419, 16
  %v498 = vpop.permute.xlu0 %497
  %499 = vrot.lane.b32.xlu0 %v423, 16
  %v500 = vpop.permute.xlu0 %499
  %501 = vrot.lane.b32.xlu0 %v427, 16
  %v502 = vpop.permute.xlu0 %501
  %503 = vrot.lane.b32.xlu0 %v416, 16
  %v504 = vpop.permute.xlu0 %503
  %505 = vrot.lane.b32.xlu0 %v420, 16
  %v506 = vpop.permute.xlu0 %505
  %507 = vrot.lane.b32.xlu0 %v424, 16
  %v508 = vpop.permute.xlu0 %507
  %509 = vrot.lane.b32.xlu0 %v428, 16
  %v510 = vpop.permute.xlu0 %509
  %511 = vrot.lane.b32.xlu0 %v417, 16
  %v512 = vpop.permute.xlu0 %511
  %513 = vrot.lane.b32.xlu0 %v421, 16
  %v514 = vpop.permute.xlu0 %513
  %515 = vrot.lane.b32.xlu0 %v425, 16
  %v516 = vpop.permute.xlu0 %515
  %517 = vrot.lane.b32.xlu0 %v429, 16
  %v518 = vpop.permute.xlu0 %517
  %519 = vrot.lane.b32.xlu0 %v418, 16
  %v520 = vpop.permute.xlu0 %519
  %521 = vrot.lane.b32.xlu0 %v422, 16
  %v522 = vpop.permute.xlu0 %521
  %523 = vrot.lane.b32.xlu0 %v426, 16
  %v524 = vpop.permute.xlu0 %523
  %525 = vrot.lane.b32.xlu0 %v430, 16
  %v526 = vpop.permute.xlu0 %525
  %v527 = vsel %vm70, %v512, %v520
  %v528 = vsel %vm70, %v514, %v522
  %v529 = vsel %vm70, %v516, %v524
  %v530 = vsel %vm70, %v518, %v526
  %v531 = vsel %vm70, %v504, %v512
  %v532 = vsel %vm70, %v506, %v514
  %v533 = vsel %vm70, %v508, %v516
  %v534 = vsel %vm70, %v510, %v518
  %v535 = vsel %vm70, %v496, %v504
  %v536 = vsel %vm70, %v498, %v506
  %v537 = vsel %vm70, %v500, %v508
  %v538 = vsel %vm70, %v502, %v510
  %v539 = vsel %vm70, %v520, %v496
  %v540 = vsel %vm70, %v522, %v498
  %v541 = vsel %vm70, %v524, %v500
  %v542 = vsel %vm70, %v526, %v502
  %v543 = vmul.f32 %v539, %v78
  %v544 = vmul.f32 %v535, %v79
  %v545 = vmul.f32 %v531, %v80
  %v546 = vmul.f32 %v527, %v81
  %v547 = vmul.f32 %v540, %v78
  %v548 = vmul.f32 %v536, %v79
  %v549 = vmul.f32 %v532, %v80
  %v550 = vmul.f32 %v528, %v81
  %v551 = vmul.f32 %v541, %v78
  %v552 = vmul.f32 %v537, %v79
  %v553 = vmul.f32 %v533, %v80
  %v554 = vmul.f32 %v529, %v81
  %v555 = vmul.f32 %v542, %v78
  %v556 = vmul.f32 %v538, %v79
  %v557 = vmul.f32 %v534, %v80
  %v558 = vmul.f32 %v530, %v81
  %559 = vrot.lane.b32.xlu0 %v415, 15
  %v560 = vpop.permute.xlu0 %559
  %561 = vrot.lane.b32.xlu0 %v419, 15
  %v562 = vpop.permute.xlu0 %561
  %563 = vrot.lane.b32.xlu0 %v423, 15
  %v564 = vpop.permute.xlu0 %563
  %565 = vrot.lane.b32.xlu0 %v427, 15
  %v566 = vpop.permute.xlu0 %565
  %567 = vrot.lane.b32.xlu0 %v416, 15
  %v568 = vpop.permute.xlu0 %567
  %569 = vrot.lane.b32.xlu0 %v420, 15
  %v570 = vpop.permute.xlu0 %569
  %571 = vrot.lane.b32.xlu0 %v424, 15
  %v572 = vpop.permute.xlu0 %571
  %573 = vrot.lane.b32.xlu0 %v428, 15
  %v574 = vpop.permute.xlu0 %573
  %575 = vrot.lane.b32.xlu0 %v417, 15
  %v576 = vpop.permute.xlu0 %575
  %577 = vrot.lane.b32.xlu0 %v421, 15
  %v578 = vpop.permute.xlu0 %577
  %579 = vrot.lane.b32.xlu0 %v425, 15
  %v580 = vpop.permute.xlu0 %579
  %581 = vrot.lane.b32.xlu0 %v429, 15
  %v582 = vpop.permute.xlu0 %581
  %583 = vrot.lane.b32.xlu0 %v418, 15
  %v584 = vpop.permute.xlu0 %583
  %585 = vrot.lane.b32.xlu0 %v422, 15
  %v586 = vpop.permute.xlu0 %585
  %587 = vrot.lane.b32.xlu0 %v426, 15
  %v588 = vpop.permute.xlu0 %587
  %589 = vrot.lane.b32.xlu0 %v430, 15
  %v590 = vpop.permute.xlu0 %589
  %v591 = vsel %vm98, %v576, %v584
  %v592 = vsel %vm98, %v578, %v586
  %v593 = vsel %vm98, %v580, %v588
  %v594 = vsel %vm98, %v582, %v590
  %v595 = vsel %vm98, %v568, %v576
  %v596 = vsel %vm98, %v570, %v578
  %v597 = vsel %vm98, %v572, %v580
  %v598 = vsel %vm98, %v574, %v582
  %v599 = vsel %vm98, %v560, %v568
  %v600 = vsel %vm98, %v562, %v570
  %v601 = vsel %vm98, %v564, %v572
  %v602 = vsel %vm98, %v566, %v574
  %v603 = vsel %vm98, %v584, %v560
  %v604 = vsel %vm98, %v586, %v562
  %v605 = vsel %vm98, %v588, %v564
  %v606 = vsel %vm98, %v590, %v566
  %v607 = vmul.f32 %v603, %v106
  %v608 = vmul.f32 %v599, %v107
  %v609 = vmul.f32 %v595, %v108
  %v610 = vmul.f32 %v591, %v109
  %v611 = vmul.f32 %v604, %v106
  %v612 = vmul.f32 %v600, %v107
  %v613 = vmul.f32 %v596, %v108
  %v614 = vmul.f32 %v592, %v109
  %v615 = vmul.f32 %v605, %v106
  %v616 = vmul.f32 %v601, %v107
  %v617 = vmul.f32 %v597, %v108
  %v618 = vmul.f32 %v593, %v109
  %v619 = vmul.f32 %v606, %v106
  %v620 = vmul.f32 %v602, %v107
  %v621 = vmul.f32 %v598, %v108
  %v622 = vmul.f32 %v594, %v109
  %623 = vrot.lane.b32.xlu0 %v415, 1
  %v624 = vpop.permute.xlu0 %623
  %625 = vrot.lane.b32.xlu0 %v419, 1
  %v626 = vpop.permute.xlu0 %625
  %627 = vrot.lane.b32.xlu0 %v423, 1
  %v628 = vpop.permute.xlu0 %627
  %629 = vrot.lane.b32.xlu0 %v427, 1
  %v630 = vpop.permute.xlu0 %629
  %631 = vrot.lane.b32.xlu0 %v416, 1
  %v632 = vpop.permute.xlu0 %631
  %633 = vrot.lane.b32.xlu0 %v420, 1
  %v634 = vpop.permute.xlu0 %633
  %635 = vrot.lane.b32.xlu0 %v424, 1
  %v636 = vpop.permute.xlu0 %635
  %637 = vrot.lane.b32.xlu0 %v428, 1
  %v638 = vpop.permute.xlu0 %637
  %639 = vrot.lane.b32.xlu0 %v417, 1
  %v640 = vpop.permute.xlu0 %639
  %641 = vrot.lane.b32.xlu0 %v421, 1
  %v642 = vpop.permute.xlu0 %641
  %643 = vrot.lane.b32.xlu0 %v425, 1
  %v644 = vpop.permute.xlu0 %643
  %645 = vrot.lane.b32.xlu0 %v429, 1
  %v646 = vpop.permute.xlu0 %645
  %647 = vrot.lane.b32.xlu0 %v418, 1
  %v648 = vpop.permute.xlu0 %647
  %649 = vrot.lane.b32.xlu0 %v422, 1
  %v650 = vpop.permute.xlu0 %649
  %651 = vrot.lane.b32.xlu0 %v426, 1
  %v652 = vpop.permute.xlu0 %651
  %653 = vrot.lane.b32.xlu0 %v430, 1
  %v654 = vpop.permute.xlu0 %653
  %v655 = vsel %vm126, %v640, %v648
  %v656 = vsel %vm126, %v642, %v650
  %v657 = vsel %vm126, %v644, %v652
  %v658 = vsel %vm126, %v646, %v654
  %v659 = vsel %vm126, %v632, %v640
  %v660 = vsel %vm126, %v634, %v642
  %v661 = vsel %vm126, %v636, %v644
  %v662 = vsel %vm126, %v638, %v646
  %v663 = vsel %vm126, %v624, %v632
  %v664 = vsel %vm126, %v626, %v634
  %v665 = vsel %vm126, %v628, %v636
  %v666 = vsel %vm126, %v630, %v638
  %v667 = vsel %vm126, %v648, %v624
  %v668 = vsel %vm126, %v650, %v626
  %v669 = vsel %vm126, %v652, %v628
  %v670 = vsel %vm126, %v654, %v630
  %v671 = vmul.f32 %v667, %v134
  %v672 = vmul.f32 %v663, %v135
  %v673 = vmul.f32 %v659, %v136
  %v674 = vmul.f32 %v655, %v137
  %v675 = vmul.f32 %v668, %v134
  %v676 = vmul.f32 %v664, %v135
  %v677 = vmul.f32 %v660, %v136
  %v678 = vmul.f32 %v656, %v137
  %v679 = vmul.f32 %v669, %v134
  %v680 = vmul.f32 %v665, %v135
  %v681 = vmul.f32 %v661, %v136
  %v682 = vmul.f32 %v657, %v137
  %v683 = vmul.f32 %v670, %v134
  %v684 = vmul.f32 %v666, %v135
  %v685 = vmul.f32 %v662, %v136
  %v686 = vmul.f32 %v658, %v137
  %687 = vrot.lane.b32.xlu0 %v415, 127
  %v688 = vpop.permute.xlu0 %687
  %689 = vrot.lane.b32.xlu0 %v419, 127
  %v690 = vpop.permute.xlu0 %689
  %691 = vrot.lane.b32.xlu0 %v423, 127
  %v692 = vpop.permute.xlu0 %691
  %693 = vrot.lane.b32.xlu0 %v427, 127
  %v694 = vpop.permute.xlu0 %693
  %695 = vrot.lane.b32.xlu0 %v416, 127
  %v696 = vpop.permute.xlu0 %695
  %697 = vrot.lane.b32.xlu0 %v420, 127
  %v698 = vpop.permute.xlu0 %697
  %699 = vrot.lane.b32.xlu0 %v424, 127
  %v700 = vpop.permute.xlu0 %699
  %701 = vrot.lane.b32.xlu0 %v428, 127
  %v702 = vpop.permute.xlu0 %701
  %703 = vrot.lane.b32.xlu0 %v417, 127
  %v704 = vpop.permute.xlu0 %703
  %705 = vrot.lane.b32.xlu0 %v421, 127
  %v706 = vpop.permute.xlu0 %705
  %707 = vrot.lane.b32.xlu0 %v425, 127
  %v708 = vpop.permute.xlu0 %707
  %709 = vrot.lane.b32.xlu0 %v429, 127
  %v710 = vpop.permute.xlu0 %709
  %711 = vrot.lane.b32.xlu0 %v418, 127
  %v712 = vpop.permute.xlu0 %711
  %713 = vrot.lane.b32.xlu0 %v422, 127
  %v714 = vpop.permute.xlu0 %713
  %715 = vrot.lane.b32.xlu0 %v426, 127
  %v716 = vpop.permute.xlu0 %715
  %717 = vrot.lane.b32.xlu0 %v430, 127
  %v718 = vpop.permute.xlu0 %717
  %v719 = vsel %vm154, %v704, %v712
  %v720 = vsel %vm154, %v706, %v714
  %v721 = vsel %vm154, %v708, %v716
  %v722 = vsel %vm154, %v710, %v718
  %v723 = vsel %vm154, %v696, %v704
  %v724 = vsel %vm154, %v698, %v706
  %v725 = vsel %vm154, %v700, %v708
  %v726 = vsel %vm154, %v702, %v710
  %v727 = vsel %vm154, %v688, %v696
  %v728 = vsel %vm154, %v690, %v698
  %v729 = vsel %vm154, %v692, %v700
  %v730 = vsel %vm154, %v694, %v702
  %v731 = vsel %vm154, %v712, %v688
  %v732 = vsel %vm154, %v714, %v690
  %v733 = vsel %vm154, %v716, %v692
  %v734 = vsel %vm154, %v718, %v694
  %v735 = vmul.f32 %v727, %v162
  %v736 = vmul.f32 %v723, %v163
  %v737 = vmul.f32 %v719, %v164
  %v738 = vmul.f32 %v731, %v165
  %v739 = vmul.f32 %v728, %v162
  %v740 = vmul.f32 %v724, %v163
  %v741 = vmul.f32 %v720, %v164
  %v742 = vmul.f32 %v732, %v165
  %v743 = vmul.f32 %v729, %v162
  %v744 = vmul.f32 %v725, %v163
  %v745 = vmul.f32 %v721, %v164
  %v746 = vmul.f32 %v733, %v165
  %v747 = vmul.f32 %v730, %v162
  %v748 = vmul.f32 %v726, %v163
  %v749 = vmul.f32 %v722, %v164
  %v750 = vmul.f32 %v734, %v165
  %751 = vrot.lane.b32.xlu0 %v415, 113
  %v752 = vpop.permute.xlu0 %751
  %753 = vrot.lane.b32.xlu0 %v419, 113
  %v754 = vpop.permute.xlu0 %753
  %755 = vrot.lane.b32.xlu0 %v423, 113
  %v756 = vpop.permute.xlu0 %755
  %757 = vrot.lane.b32.xlu0 %v427, 113
  %v758 = vpop.permute.xlu0 %757
  %759 = vrot.lane.b32.xlu0 %v416, 113
  %v760 = vpop.permute.xlu0 %759
  %761 = vrot.lane.b32.xlu0 %v420, 113
  %v762 = vpop.permute.xlu0 %761
  %763 = vrot.lane.b32.xlu0 %v424, 113
  %v764 = vpop.permute.xlu0 %763
  %765 = vrot.lane.b32.xlu0 %v428, 113
  %v766 = vpop.permute.xlu0 %765
  %767 = vrot.lane.b32.xlu0 %v417, 113
  %v768 = vpop.permute.xlu0 %767
  %769 = vrot.lane.b32.xlu0 %v421, 113
  %v770 = vpop.permute.xlu0 %769
  %771 = vrot.lane.b32.xlu0 %v425, 113
  %v772 = vpop.permute.xlu0 %771
  %773 = vrot.lane.b32.xlu0 %v429, 113
  %v774 = vpop.permute.xlu0 %773
  %775 = vrot.lane.b32.xlu0 %v418, 113
  %v776 = vpop.permute.xlu0 %775
  %777 = vrot.lane.b32.xlu0 %v422, 113
  %v778 = vpop.permute.xlu0 %777
  %779 = vrot.lane.b32.xlu0 %v426, 113
  %v780 = vpop.permute.xlu0 %779
  %781 = vrot.lane.b32.xlu0 %v430, 113
  %v782 = vpop.permute.xlu0 %781
  %v783 = vsel %vm182, %v768, %v776
  %v784 = vsel %vm182, %v770, %v778
  %v785 = vsel %vm182, %v772, %v780
  %v786 = vsel %vm182, %v774, %v782
  %v787 = vsel %vm182, %v760, %v768
  %v788 = vsel %vm182, %v762, %v770
  %v789 = vsel %vm182, %v764, %v772
  %v790 = vsel %vm182, %v766, %v774
  %v791 = vsel %vm182, %v752, %v760
  %v792 = vsel %vm182, %v754, %v762
  %v793 = vsel %vm182, %v756, %v764
  %v794 = vsel %vm182, %v758, %v766
  %v795 = vsel %vm182, %v776, %v752
  %v796 = vsel %vm182, %v778, %v754
  %v797 = vsel %vm182, %v780, %v756
  %v798 = vsel %vm182, %v782, %v758
  %v799 = vmul.f32 %v791, %v190
  %v800 = vmul.f32 %v787, %v191
  %v801 = vmul.f32 %v783, %v192
  %v802 = vmul.f32 %v795, %v193
  %v803 = vmul.f32 %v792, %v190
  %v804 = vmul.f32 %v788, %v191
  %v805 = vmul.f32 %v784, %v192
  %v806 = vmul.f32 %v796, %v193
  %v807 = vmul.f32 %v793, %v190
  %v808 = vmul.f32 %v789, %v191
  %v809 = vmul.f32 %v785, %v192
  %v810 = vmul.f32 %v797, %v193
  %v811 = vmul.f32 %v794, %v190
  %v812 = vmul.f32 %v790, %v191
  %v813 = vmul.f32 %v786, %v192
  %v814 = vmul.f32 %v798, %v193
  %815 = vrot.lane.b32.xlu0 %v415, 112
  %v816 = vpop.permute.xlu0 %815
  %817 = vrot.lane.b32.xlu0 %v419, 112
  %v818 = vpop.permute.xlu0 %817
  %819 = vrot.lane.b32.xlu0 %v423, 112
  %v820 = vpop.permute.xlu0 %819
  %821 = vrot.lane.b32.xlu0 %v427, 112
  %v822 = vpop.permute.xlu0 %821
  %823 = vrot.lane.b32.xlu0 %v416, 112
  %v824 = vpop.permute.xlu0 %823
  %825 = vrot.lane.b32.xlu0 %v420, 112
  %v826 = vpop.permute.xlu0 %825
  %827 = vrot.lane.b32.xlu0 %v424, 112
  %v828 = vpop.permute.xlu0 %827
  %829 = vrot.lane.b32.xlu0 %v428, 112
  %v830 = vpop.permute.xlu0 %829
  %831 = vrot.lane.b32.xlu0 %v417, 112
  %v832 = vpop.permute.xlu0 %831
  %833 = vrot.lane.b32.xlu0 %v421, 112
  %v834 = vpop.permute.xlu0 %833
  %835 = vrot.lane.b32.xlu0 %v425, 112
  %v836 = vpop.permute.xlu0 %835
  %837 = vrot.lane.b32.xlu0 %v429, 112
  %v838 = vpop.permute.xlu0 %837
  %839 = vrot.lane.b32.xlu0 %v418, 112
  %v840 = vpop.permute.xlu0 %839
  %841 = vrot.lane.b32.xlu0 %v422, 112
  %v842 = vpop.permute.xlu0 %841
  %843 = vrot.lane.b32.xlu0 %v426, 112
  %v844 = vpop.permute.xlu0 %843
  %845 = vrot.lane.b32.xlu0 %v430, 112
  %v846 = vpop.permute.xlu0 %845
  %v847 = vsel %vm210, %v832, %v840
  %v848 = vsel %vm210, %v834, %v842
  %v849 = vsel %vm210, %v836, %v844
  %v850 = vsel %vm210, %v838, %v846
  %v851 = vsel %vm210, %v824, %v832
  %v852 = vsel %vm210, %v826, %v834
  %v853 = vsel %vm210, %v828, %v836
  %v854 = vsel %vm210, %v830, %v838
  %v855 = vsel %vm210, %v816, %v824
  %v856 = vsel %vm210, %v818, %v826
  %v857 = vsel %vm210, %v820, %v828
  %v858 = vsel %vm210, %v822, %v830
  %v859 = vsel %vm210, %v840, %v816
  %v860 = vsel %vm210, %v842, %v818
  %v861 = vsel %vm210, %v844, %v820
  %v862 = vsel %vm210, %v846, %v822
  %v863 = vmul.f32 %v855, %v218
  %v864 = vmul.f32 %v851, %v219
  %v865 = vmul.f32 %v847, %v220
  %v866 = vmul.f32 %v859, %v221
  %v867 = vmul.f32 %v856, %v218
  %v868 = vmul.f32 %v852, %v219
  %v869 = vmul.f32 %v848, %v220
  %v870 = vmul.f32 %v860, %v221
  %v871 = vmul.f32 %v857, %v218
  %v872 = vmul.f32 %v853, %v219
  %v873 = vmul.f32 %v849, %v220
  %v874 = vmul.f32 %v861, %v221
  %v875 = vmul.f32 %v858, %v218
  %v876 = vmul.f32 %v854, %v219
  %v877 = vmul.f32 %v850, %v220
  %v878 = vmul.f32 %v862, %v221
  %879 = vrot.lane.b32.xlu0 %v415, 111
  %v880 = vpop.permute.xlu0 %879
  %881 = vrot.lane.b32.xlu0 %v419, 111
  %v882 = vpop.permute.xlu0 %881
  %883 = vrot.lane.b32.xlu0 %v423, 111
  %v884 = vpop.permute.xlu0 %883
  %885 = vrot.lane.b32.xlu0 %v427, 111
  %v886 = vpop.permute.xlu0 %885
  %887 = vrot.lane.b32.xlu0 %v416, 111
  %v888 = vpop.permute.xlu0 %887
  %889 = vrot.lane.b32.xlu0 %v420, 111
  %v890 = vpop.permute.xlu0 %889
  %891 = vrot.lane.b32.xlu0 %v424, 111
  %v892 = vpop.permute.xlu0 %891
  %893 = vrot.lane.b32.xlu0 %v428, 111
  %v894 = vpop.permute.xlu0 %893
  %895 = vrot.lane.b32.xlu0 %v417, 111
  %v896 = vpop.permute.xlu0 %895
  %897 = vrot.lane.b32.xlu0 %v421, 111
  %v898 = vpop.permute.xlu0 %897
  %899 = vrot.lane.b32.xlu0 %v425, 111
  %v900 = vpop.permute.xlu0 %899
  %901 = vrot.lane.b32.xlu0 %v429, 111
  %v902 = vpop.permute.xlu0 %901
  %903 = vrot.lane.b32.xlu0 %v418, 111
  %v904 = vpop.permute.xlu0 %903
  %905 = vrot.lane.b32.xlu0 %v422, 111
  %v906 = vpop.permute.xlu0 %905
  %907 = vrot.lane.b32.xlu0 %v426, 111
  %v908 = vpop.permute.xlu0 %907
  %909 = vrot.lane.b32.xlu0 %v430, 111
  %v910 = vpop.permute.xlu0 %909
  %v911 = vsel %vm238, %v896, %v904
  %v912 = vsel %vm238, %v898, %v906
  %v913 = vsel %vm238, %v900, %v908
  %v914 = vsel %vm238, %v902, %v910
  %v915 = vsel %vm238, %v888, %v896
  %v916 = vsel %vm238, %v890, %v898
  %v917 = vsel %vm238, %v892, %v900
  %v918 = vsel %vm238, %v894, %v902
  %v919 = vsel %vm238, %v880, %v888
  %v920 = vsel %vm238, %v882, %v890
  %v921 = vsel %vm238, %v884, %v892
  %v922 = vsel %vm238, %v886, %v894
  %v923 = vsel %vm238, %v904, %v880
  %v924 = vsel %vm238, %v906, %v882
  %v925 = vsel %vm238, %v908, %v884
  %v926 = vsel %vm238, %v910, %v886
  %v927 = vmul.f32 %v919, %v246
  %v928 = vmul.f32 %v915, %v247
  %v929 = vmul.f32 %v911, %v248
  %v930 = vmul.f32 %v923, %v249
  %v931 = vmul.f32 %v920, %v246
  %v932 = vmul.f32 %v916, %v247
  %v933 = vmul.f32 %v912, %v248
  %v934 = vmul.f32 %v924, %v249
  %v935 = vmul.f32 %v921, %v246
  %v936 = vmul.f32 %v917, %v247
  %v937 = vmul.f32 %v913, %v248
  %v938 = vmul.f32 %v925, %v249
  %v939 = vmul.f32 %v922, %v246
  %v940 = vmul.f32 %v918, %v247
  %v941 = vmul.f32 %v914, %v248
  %v942 = vmul.f32 %v926, %v249
  %v943 = vld [vmem:[%s4] sm:$0xff]
  %v944 = vld [vmem:[%s4 + $0x8] sm:$0xff]
  %v945 = vld [vmem:[%s4 + $0x10] sm:$0xff]
  %v946 = vld [vmem:[%s4 + $0x18] sm:$0xff]
  %v947 = vld [vmem:[%s4 + $0x20] sm:$0xff]
  %v948 = vld [vmem:[%s4 + $0x28] sm:$0xff]
  %v949 = vld [vmem:[%s4 + $0x30] sm:$0xff]
  %v950 = vld [vmem:[%s4 + $0x38] sm:$0xff]
  %v951 = vld [vmem:[%s4 + $0x40] sm:$0xff]
  %v952 = vld [vmem:[%s4 + $0x48] sm:$0xff]
  %v953 = vld [vmem:[%s4 + $0x50] sm:$0xff]
  %v954 = vld [vmem:[%s4 + $0x58] sm:$0xff]
  %v955 = vld [vmem:[%s5] sm:$0xff]
  %v956 = vld [vmem:[%s5 + $0x8] sm:$0xff]
  %v957 = vld [vmem:[%s5 + $0x10] sm:$0xff]
  %v958 = vld [vmem:[%s5 + $0x18] sm:$0xff]
  %960 = vset.pattern.permute.xlu0 0
  %961 = vperm.xlu0 %960, %v955
  %v962 = vpop.permute.xlu0 %961
  %965 = vset.pattern.permute.xlu0 0
  %966 = vperm.xlu0 %965, %v956
  %v967 = vpop.permute.xlu0 %966
  %970 = vset.pattern.permute.xlu0 0
  %971 = vperm.xlu0 %970, %v957
  %v972 = vpop.permute.xlu0 %971
  %975 = vset.pattern.permute.xlu0 0
  %976 = vperm.xlu0 %975, %v958
  %v977 = vpop.permute.xlu0 %976
  %vm979 = vcmask 261120
  %v981 = vsel %vm979, %v945, 0
  %v984 = vsel %vm979, %v948, 0
  %v987 = vsel %vm979, %v951, 0
  %v990 = vsel %vm979, %v954, 0
  %992 = vmatpush.msra.mxu0 %v683
  %993 = vmatpush.msra.mxu0 %v679
  %994 = vmatpush.msra.mxu0 %v675
  %995 = vmatpush.msra.mxu0 %v671
  %996 = vmatpush.msra.mxu0 %v619
  %997 = vmatpush.msra.mxu0 %v615
  %998 = vmatpush.msra.mxu0 %v611
  %999 = vmatpush.msra.mxu0 %v607
  %1000 = vmatpush.msra.mxu0 %v555
  %1001 = vmatpush.msra.mxu0 %v551
  %1002 = vmatpush.msra.mxu0 %v547
  %1003 = vmatpush.msra.mxu0 %v543
  %1004 = vmatpush.msra.mxu0 %v491
  %1005 = vmatpush.msra.mxu0 %v487
  %1006 = vmatpush.msra.mxu0 %v483
  %1007 = vmatpush.msra.mxu0 %v479
  %1008 = vmatmul.f32.gmra.mxu0 %v943
  %v1009 = vpop.f32.mrf.mxu0
  %v1010 = vadd.f32 %v962, %v1009
  %1011 = vmatmul.f32.gmra.mxu0 %v946
  %v1012 = vpop.f32.mrf.mxu0
  %v1013 = vadd.f32 %v967, %v1012
  %1014 = vmatmul.f32.gmra.mxu0 %v949
  %v1015 = vpop.f32.mrf.mxu0
  %v1016 = vadd.f32 %v972, %v1015
  %1017 = vmatmul.f32.gmra.mxu0 %v952
  %v1018 = vpop.f32.mrf.mxu0
  %v1019 = vadd.f32 %v977, %v1018
  %1020 = vdwg.mxu0
  %1021 = vmatpush.msra.mxu0 %v875
  %1022 = vmatpush.msra.mxu0 %v871
  %1023 = vmatpush.msra.mxu0 %v867
  %1024 = vmatpush.msra.mxu0 %v863
  %1025 = vmatpush.msra.mxu0 %v811
  %1026 = vmatpush.msra.mxu0 %v807
  %1027 = vmatpush.msra.mxu0 %v803
  %1028 = vmatpush.msra.mxu0 %v799
  %1029 = vmatpush.msra.mxu0 %v747
  %1030 = vmatpush.msra.mxu0 %v743
  %1031 = vmatpush.msra.mxu0 %v739
  %1032 = vmatpush.msra.mxu0 %v735
  %1033 = vmatpush.msra.mxu0 %v427
  %1034 = vmatpush.msra.mxu0 %v423
  %1035 = vmatpush.msra.mxu0 %v419
  %1036 = vmatpush.msra.mxu0 %v415
  %1037 = vmatmul.f32.gmra.mxu0 %v944
  %v1038 = vpop.f32.mrf.mxu0
  %v1039 = vadd.f32 %v1010, %v1038
  %1040 = vmatmul.f32.gmra.mxu0 %v947
  %v1041 = vpop.f32.mrf.mxu0
  %v1042 = vadd.f32 %v1013, %v1041
  %1043 = vmatmul.f32.gmra.mxu0 %v950
  %v1044 = vpop.f32.mrf.mxu0
  %v1045 = vadd.f32 %v1016, %v1044
  %1046 = vmatmul.f32.gmra.mxu0 %v953
  %v1047 = vpop.f32.mrf.mxu0
  %v1048 = vadd.f32 %v1019, %v1047
  %1049 = vdwg.mxu0
  %1050 = vmatpush.msra.mxu0 0.0
  %1051 = vmatpush.msra.mxu0 0.0
  %1052 = vmatpush.msra.mxu0 0.0
  %1053 = vmatpush.msra.mxu0 0.0
  %1054 = vmatpush.msra.mxu0 0.0
  %1055 = vmatpush.msra.mxu0 0.0
  %1056 = vmatpush.msra.mxu0 0.0
  %1057 = vmatpush.msra.mxu0 0.0
  %1058 = vmatpush.msra.mxu0 0.0
  %1059 = vmatpush.msra.mxu0 0.0
  %1060 = vmatpush.msra.mxu0 0.0
  %1061 = vmatpush.msra.mxu0 0.0
  %1062 = vmatpush.msra.mxu0 %v939
  %1063 = vmatpush.msra.mxu0 %v935
  %1064 = vmatpush.msra.mxu0 %v931
  %1065 = vmatpush.msra.mxu0 %v927
  %1066 = vmatmul.f32.gmra.mxu0 %v981
  %v1067 = vpop.f32.mrf.mxu0
  %v1068 = vadd.f32 %v1039, %v1067
  %1069 = vmatmul.f32.gmra.mxu0 %v984
  %v1070 = vpop.f32.mrf.mxu0
  %v1071 = vadd.f32 %v1042, %v1070
  %1072 = vmatmul.f32.gmra.mxu0 %v987
  %v1073 = vpop.f32.mrf.mxu0
  %v1074 = vadd.f32 %v1045, %v1073
  %1075 = vmatmul.f32.gmra.mxu0 %v990
  %v1076 = vpop.f32.mrf.mxu0
  %v1077 = vadd.f32 %v1048, %v1076
  %1078 = vdwg.mxu0
  %1079 = vmatpush.msra.mxu0 %v684
  %1080 = vmatpush.msra.mxu0 %v680
  %1081 = vmatpush.msra.mxu0 %v676
  %1082 = vmatpush.msra.mxu0 %v672
  %1083 = vmatpush.msra.mxu0 %v620
  %1084 = vmatpush.msra.mxu0 %v616
  %1085 = vmatpush.msra.mxu0 %v612
  %1086 = vmatpush.msra.mxu0 %v608
  %1087 = vmatpush.msra.mxu0 %v556
  %1088 = vmatpush.msra.mxu0 %v552
  %1089 = vmatpush.msra.mxu0 %v548
  %1090 = vmatpush.msra.mxu0 %v544
  %1091 = vmatpush.msra.mxu0 %v492
  %1092 = vmatpush.msra.mxu0 %v488
  %1093 = vmatpush.msra.mxu0 %v484
  %1094 = vmatpush.msra.mxu0 %v480
  %1095 = vmatmul.f32.gmra.mxu0 %v943
  %v1096 = vpop.f32.mrf.mxu0
  %v1097 = vadd.f32 %v962, %v1096
  %1098 = vmatmul.f32.gmra.mxu0 %v946
  %v1099 = vpop.f32.mrf.mxu0
  %v1100 = vadd.f32 %v967, %v1099
  %1101 = vmatmul.f32.gmra.mxu0 %v949
  %v1102 = vpop.f32.mrf.mxu0
  %v1103 = vadd.f32 %v972, %v1102
  %1104 = vmatmul.f32.gmra.mxu0 %v952
  %v1105 = vpop.f32.mrf.mxu0
  %v1106 = vadd.f32 %v977, %v1105
  %1107 = vdwg.mxu0
  %1108 = vmatpush.msra.mxu0 %v876
  %1109 = vmatpush.msra.mxu0 %v872
  %1110 = vmatpush.msra.mxu0 %v868
  %1111 = vmatpush.msra.mxu0 %v864
  %1112 = vmatpush.msra.mxu0 %v812
  %1113 = vmatpush.msra.mxu0 %v808
  %1114 = vmatpush.msra.mxu0 %v804
  %1115 = vmatpush.msra.mxu0 %v800
  %1116 = vmatpush.msra.mxu0 %v748
  %1117 = vmatpush.msra.mxu0 %v744
  %1118 = vmatpush.msra.mxu0 %v740
  %1119 = vmatpush.msra.mxu0 %v736
  %1120 = vmatpush.msra.mxu0 %v428
  %1121 = vmatpush.msra.mxu0 %v424
  %1122 = vmatpush.msra.mxu0 %v420
  %1123 = vmatpush.msra.mxu0 %v416
  %1124 = vmatmul.f32.gmra.mxu0 %v944
  %v1125 = vpop.f32.mrf.mxu0
  %v1126 = vadd.f32 %v1097, %v1125
  %1127 = vmatmul.f32.gmra.mxu0 %v947
  %v1128 = vpop.f32.mrf.mxu0
  %v1129 = vadd.f32 %v1100, %v1128
  %1130 = vmatmul.f32.gmra.mxu0 %v950
  %v1131 = vpop.f32.mrf.mxu0
  %v1132 = vadd.f32 %v1103, %v1131
  %1133 = vmatmul.f32.gmra.mxu0 %v953
  %v1134 = vpop.f32.mrf.mxu0
  %v1135 = vadd.f32 %v1106, %v1134
  %1136 = vdwg.mxu0
  %1137 = vmatpush.msra.mxu0 0.0
  %1138 = vmatpush.msra.mxu0 0.0
  %1139 = vmatpush.msra.mxu0 0.0
  %1140 = vmatpush.msra.mxu0 0.0
  %1141 = vmatpush.msra.mxu0 0.0
  %1142 = vmatpush.msra.mxu0 0.0
  %1143 = vmatpush.msra.mxu0 0.0
  %1144 = vmatpush.msra.mxu0 0.0
  %1145 = vmatpush.msra.mxu0 0.0
  %1146 = vmatpush.msra.mxu0 0.0
  %1147 = vmatpush.msra.mxu0 0.0
  %1148 = vmatpush.msra.mxu0 0.0
  %1149 = vmatpush.msra.mxu0 %v940
  %1150 = vmatpush.msra.mxu0 %v936
  %1151 = vmatpush.msra.mxu0 %v932
  %1152 = vmatpush.msra.mxu0 %v928
  %1153 = vmatmul.f32.gmra.mxu0 %v981
  %v1154 = vpop.f32.mrf.mxu0
  %v1155 = vadd.f32 %v1126, %v1154
  %1156 = vmatmul.f32.gmra.mxu0 %v984
  %v1157 = vpop.f32.mrf.mxu0
  %v1158 = vadd.f32 %v1129, %v1157
  %1159 = vmatmul.f32.gmra.mxu0 %v987
  %v1160 = vpop.f32.mrf.mxu0
  %v1161 = vadd.f32 %v1132, %v1160
  %1162 = vmatmul.f32.gmra.mxu0 %v990
  %v1163 = vpop.f32.mrf.mxu0
  %v1164 = vadd.f32 %v1135, %v1163
  %1165 = vdwg.mxu0
  %1166 = vmatpush.msra.mxu0 %v685
  %1167 = vmatpush.msra.mxu0 %v681
  %1168 = vmatpush.msra.mxu0 %v677
  %1169 = vmatpush.msra.mxu0 %v673
  %1170 = vmatpush.msra.mxu0 %v621
  %1171 = vmatpush.msra.mxu0 %v617
  %1172 = vmatpush.msra.mxu0 %v613
  %1173 = vmatpush.msra.mxu0 %v609
  %1174 = vmatpush.msra.mxu0 %v557
  %1175 = vmatpush.msra.mxu0 %v553
  %1176 = vmatpush.msra.mxu0 %v549
  %1177 = vmatpush.msra.mxu0 %v545
  %1178 = vmatpush.msra.mxu0 %v493
  %1179 = vmatpush.msra.mxu0 %v489
  %1180 = vmatpush.msra.mxu0 %v485
  %1181 = vmatpush.msra.mxu0 %v481
  %1182 = vmatmul.f32.gmra.mxu0 %v943
  %v1183 = vpop.f32.mrf.mxu0
  %v1184 = vadd.f32 %v962, %v1183
  %1185 = vmatmul.f32.gmra.mxu0 %v946
  %v1186 = vpop.f32.mrf.mxu0
  %v1187 = vadd.f32 %v967, %v1186
  %1188 = vmatmul.f32.gmra.mxu0 %v949
  %v1189 = vpop.f32.mrf.mxu0
  %v1190 = vadd.f32 %v972, %v1189
  %1191 = vmatmul.f32.gmra.mxu0 %v952
  %v1192 = vpop.f32.mrf.mxu0
  %v1193 = vadd.f32 %v977, %v1192
  %1194 = vdwg.mxu0
  %1195 = vmatpush.msra.mxu0 %v877
  %1196 = vmatpush.msra.mxu0 %v873
  %1197 = vmatpush.msra.mxu0 %v869
  %1198 = vmatpush.msra.mxu0 %v865
  %1199 = vmatpush.msra.mxu0 %v813
  %1200 = vmatpush.msra.mxu0 %v809
  %1201 = vmatpush.msra.mxu0 %v805
  %1202 = vmatpush.msra.mxu0 %v801
  %1203 = vmatpush.msra.mxu0 %v749
  %1204 = vmatpush.msra.mxu0 %v745
  %1205 = vmatpush.msra.mxu0 %v741
  %1206 = vmatpush.msra.mxu0 %v737
  %1207 = vmatpush.msra.mxu0 %v429
  %1208 = vmatpush.msra.mxu0 %v425
  %1209 = vmatpush.msra.mxu0 %v421
  %1210 = vmatpush.msra.mxu0 %v417
  %1211 = vmatmul.f32.gmra.mxu0 %v944
  %v1212 = vpop.f32.mrf.mxu0
  %v1213 = vadd.f32 %v1184, %v1212
  %1214 = vmatmul.f32.gmra.mxu0 %v947
  %v1215 = vpop.f32.mrf.mxu0
  %v1216 = vadd.f32 %v1187, %v1215
  %1217 = vmatmul.f32.gmra.mxu0 %v950
  %v1218 = vpop.f32.mrf.mxu0
  %v1219 = vadd.f32 %v1190, %v1218
  %1220 = vmatmul.f32.gmra.mxu0 %v953
  %v1221 = vpop.f32.mrf.mxu0
  %v1222 = vadd.f32 %v1193, %v1221
  %1223 = vdwg.mxu0
  %1224 = vmatpush.msra.mxu0 0.0
  %1225 = vmatpush.msra.mxu0 0.0
  %1226 = vmatpush.msra.mxu0 0.0
  %1227 = vmatpush.msra.mxu0 0.0
  %1228 = vmatpush.msra.mxu0 0.0
  %1229 = vmatpush.msra.mxu0 0.0
  %1230 = vmatpush.msra.mxu0 0.0
  %1231 = vmatpush.msra.mxu0 0.0
  %1232 = vmatpush.msra.mxu0 0.0
  %1233 = vmatpush.msra.mxu0 0.0
  %1234 = vmatpush.msra.mxu0 0.0
  %1235 = vmatpush.msra.mxu0 0.0
  %1236 = vmatpush.msra.mxu0 %v941
  %1237 = vmatpush.msra.mxu0 %v937
  %1238 = vmatpush.msra.mxu0 %v933
  %1239 = vmatpush.msra.mxu0 %v929
  %1240 = vmatmul.f32.gmra.mxu0 %v981
  %v1241 = vpop.f32.mrf.mxu0
  %v1242 = vadd.f32 %v1213, %v1241
  %1243 = vmatmul.f32.gmra.mxu0 %v984
  %v1244 = vpop.f32.mrf.mxu0
  %v1245 = vadd.f32 %v1216, %v1244
  %1246 = vmatmul.f32.gmra.mxu0 %v987
  %v1247 = vpop.f32.mrf.mxu0
  %v1248 = vadd.f32 %v1219, %v1247
  %1249 = vmatmul.f32.gmra.mxu0 %v990
  %v1250 = vpop.f32.mrf.mxu0
  %v1251 = vadd.f32 %v1222, %v1250
  %1252 = vdwg.mxu0
  %1253 = vmatpush.msra.mxu0 %v686
  %1254 = vmatpush.msra.mxu0 %v682
  %1255 = vmatpush.msra.mxu0 %v678
  %1256 = vmatpush.msra.mxu0 %v674
  %1257 = vmatpush.msra.mxu0 %v622
  %1258 = vmatpush.msra.mxu0 %v618
  %1259 = vmatpush.msra.mxu0 %v614
  %1260 = vmatpush.msra.mxu0 %v610
  %1261 = vmatpush.msra.mxu0 %v558
  %1262 = vmatpush.msra.mxu0 %v554
  %1263 = vmatpush.msra.mxu0 %v550
  %1264 = vmatpush.msra.mxu0 %v546
  %1265 = vmatpush.msra.mxu0 %v494
  %1266 = vmatpush.msra.mxu0 %v490
  %1267 = vmatpush.msra.mxu0 %v486
  %1268 = vmatpush.msra.mxu0 %v482
  %1269 = vmatmul.f32.gmra.mxu0 %v943
  %v1270 = vpop.f32.mrf.mxu0
  %v1271 = vadd.f32 %v962, %v1270
  %1272 = vmatmul.f32.gmra.mxu0 %v946
  %v1273 = vpop.f32.mrf.mxu0
  %v1274 = vadd.f32 %v967, %v1273
  %1275 = vmatmul.f32.gmra.mxu0 %v949
  %v1276 = vpop.f32.mrf.mxu0
  %v1277 = vadd.f32 %v972, %v1276
  %1278 = vmatmul.f32.gmra.mxu0 %v952
  %v1279 = vpop.f32.mrf.mxu0
  %v1280 = vadd.f32 %v977, %v1279
  %1281 = vdwg.mxu0
  %1282 = vmatpush.msra.mxu0 %v878
  %1283 = vmatpush.msra.mxu0 %v874
  %1284 = vmatpush.msra.mxu0 %v870
  %1285 = vmatpush.msra.mxu0 %v866
  %1286 = vmatpush.msra.mxu0 %v814
  %1287 = vmatpush.msra.mxu0 %v810
  %1288 = vmatpush.msra.mxu0 %v806
  %1289 = vmatpush.msra.mxu0 %v802
  %1290 = vmatpush.msra.mxu0 %v750
  %1291 = vmatpush.msra.mxu0 %v746
  %1292 = vmatpush.msra.mxu0 %v742
  %1293 = vmatpush.msra.mxu0 %v738
  %1294 = vmatpush.msra.mxu0 %v430
  %1295 = vmatpush.msra.mxu0 %v426
  %1296 = vmatpush.msra.mxu0 %v422
  %1297 = vmatpush.msra.mxu0 %v418
  %1298 = vmatmul.f32.gmra.mxu0 %v944
  %v1299 = vpop.f32.mrf.mxu0
  %v1300 = vadd.f32 %v1271, %v1299
  %1301 = vmatmul.f32.gmra.mxu0 %v947
  %v1302 = vpop.f32.mrf.mxu0
  %v1303 = vadd.f32 %v1274, %v1302
  %1304 = vmatmul.f32.gmra.mxu0 %v950
  %v1305 = vpop.f32.mrf.mxu0
  %v1306 = vadd.f32 %v1277, %v1305
  %1307 = vmatmul.f32.gmra.mxu0 %v953
  %v1308 = vpop.f32.mrf.mxu0
  %v1309 = vadd.f32 %v1280, %v1308
  %1310 = vdwg.mxu0
  %1311 = vmatpush.msra.mxu0 0.0
  %1312 = vmatpush.msra.mxu0 0.0
  %1313 = vmatpush.msra.mxu0 0.0
  %1314 = vmatpush.msra.mxu0 0.0
  %1315 = vmatpush.msra.mxu0 0.0
  %1316 = vmatpush.msra.mxu0 0.0
  %1317 = vmatpush.msra.mxu0 0.0
  %1318 = vmatpush.msra.mxu0 0.0
  %1319 = vmatpush.msra.mxu0 0.0
  %1320 = vmatpush.msra.mxu0 0.0
  %1321 = vmatpush.msra.mxu0 0.0
  %1322 = vmatpush.msra.mxu0 0.0
  %1323 = vmatpush.msra.mxu0 %v942
  %1324 = vmatpush.msra.mxu0 %v938
  %1325 = vmatpush.msra.mxu0 %v934
  %1326 = vmatpush.msra.mxu0 %v930
  %1327 = vmatmul.f32.gmra.mxu0 %v981
  %v1328 = vpop.f32.mrf.mxu0
  %v1329 = vadd.f32 %v1300, %v1328
  %1330 = vmatmul.f32.gmra.mxu0 %v984
  %v1331 = vpop.f32.mrf.mxu0
  %v1332 = vadd.f32 %v1303, %v1331
  %1333 = vmatmul.f32.gmra.mxu0 %v987
  %v1334 = vpop.f32.mrf.mxu0
  %v1335 = vadd.f32 %v1306, %v1334
  %1336 = vmatmul.f32.gmra.mxu0 %v990
  %v1337 = vpop.f32.mrf.mxu0
  %v1338 = vadd.f32 %v1309, %v1337
  %1339 = vdwg.mxu0
  %v1340 = vmax.f32 %v1068, 0.0
  %v1341 = vmax.f32 %v1155, 0.0
  %v1342 = vmax.f32 %v1242, 0.0
  %v1343 = vmax.f32 %v1329, 0.0
  %v1344 = vmax.f32 %v1071, 0.0
  %v1345 = vmax.f32 %v1158, 0.0
  %v1346 = vmax.f32 %v1245, 0.0
  %v1347 = vmax.f32 %v1332, 0.0
  %v1348 = vmax.f32 %v1074, 0.0
  %v1349 = vmax.f32 %v1161, 0.0
  %v1350 = vmax.f32 %v1248, 0.0
  %v1351 = vmax.f32 %v1335, 0.0
  %v1352 = vmax.f32 %v1077, 0.0
  %v1353 = vmax.f32 %v1164, 0.0
  %v1354 = vmax.f32 %v1251, 0.0
  %v1355 = vmax.f32 %v1338, 0.0
  %1356 = vrot.lane.b32.xlu0 %v1340, 17
  %v1357 = vpop.permute.xlu0 %1356
  %1358 = vrot.lane.b32.xlu0 %v1344, 17
  %v1359 = vpop.permute.xlu0 %1358
  %1360 = vrot.lane.b32.xlu0 %v1348, 17
  %v1361 = vpop.permute.xlu0 %1360
  %1362 = vrot.lane.b32.xlu0 %v1352, 17
  %v1363 = vpop.permute.xlu0 %1362
  %1364 = vrot.lane.b32.xlu0 %v1341, 17
  %v1365 = vpop.permute.xlu0 %1364
  %1366 = vrot.lane.b32.xlu0 %v1345, 17
  %v1367 = vpop.permute.xlu0 %1366
  %1368 = vrot.lane.b32.xlu0 %v1349, 17
  %v1369 = vpop.permute.xlu0 %1368
  %1370 = vrot.lane.b32.xlu0 %v1353, 17
  %v1371 = vpop.permute.xlu0 %1370
  %1372 = vrot.lane.b32.xlu0 %v1342, 17
  %v1373 = vpop.permute.xlu0 %1372
  %1374 = vrot.lane.b32.xlu0 %v1346, 17
  %v1375 = vpop.permute.xlu0 %1374
  %1376 = vrot.lane.b32.xlu0 %v1350, 17
  %v1377 = vpop.permute.xlu0 %1376
  %1378 = vrot.lane.b32.xlu0 %v1354, 17
  %v1379 = vpop.permute.xlu0 %1378
  %1380 = vrot.lane.b32.xlu0 %v1343, 17
  %v1381 = vpop.permute.xlu0 %1380
  %1382 = vrot.lane.b32.xlu0 %v1347, 17
  %v1383 = vpop.permute.xlu0 %1382
  %1384 = vrot.lane.b32.xlu0 %v1351, 17
  %v1385 = vpop.permute.xlu0 %1384
  %1386 = vrot.lane.b32.xlu0 %v1355, 17
  %v1387 = vpop.permute.xlu0 %1386
  %v1388 = vsel %vm43, %v1373, %v1381
  %v1389 = vsel %vm43, %v1375, %v1383
  %v1390 = vsel %vm43, %v1377, %v1385
  %v1391 = vsel %vm43, %v1379, %v1387
  %v1392 = vsel %vm43, %v1365, %v1373
  %v1393 = vsel %vm43, %v1367, %v1375
  %v1394 = vsel %vm43, %v1369, %v1377
  %v1395 = vsel %vm43, %v1371, %v1379
  %v1396 = vsel %vm43, %v1357, %v1365
  %v1397 = vsel %vm43, %v1359, %v1367
  %v1398 = vsel %vm43, %v1361, %v1369
  %v1399 = vsel %vm43, %v1363, %v1371
  %v1400 = vsel %vm43, %v1381, %v1357
  %v1401 = vsel %vm43, %v1383, %v1359
  %v1402 = vsel %vm43, %v1385, %v1361
  %v1403 = vsel %vm43, %v1387, %v1363
  %v1404 = vmul.f32 %v1400, %v50
  %v1405 = vmul.f32 %v1396, %v51
  %v1406 = vmul.f32 %v1392, %v52
  %v1407 = vmul.f32 %v1388, %v53
  %v1408 = vmul.f32 %v1401, %v50
  %v1409 = vmul.f32 %v1397, %v51
  %v1410 = vmul.f32 %v1393, %v52
  %v1411 = vmul.f32 %v1389, %v53
  %v1412 = vmul.f32 %v1402, %v50
  %v1413 = vmul.f32 %v1398, %v51
  %v1414 = vmul.f32 %v1394, %v52
  %v1415 = vmul.f32 %v1390, %v53
  %v1416 = vmul.f32 %v1403, %v50
  %v1417 = vmul.f32 %v1399, %v51
  %v1418 = vmul.f32 %v1395, %v52
  %v1419 = vmul.f32 %v1391, %v53
  %1420 = vrot.lane.b32.xlu0 %v1340, 16
  %v1421 = vpop.permute.xlu0 %1420
  %1422 = vrot.lane.b32.xlu0 %v1344, 16
  %v1423 = vpop.permute.xlu0 %1422
  %1424 = vrot.lane.b32.xlu0 %v1348, 16
  %v1425 = vpop.permute.xlu0 %1424
  %1426 = vrot.lane.b32.xlu0 %v1352, 16
  %v1427 = vpop.permute.xlu0 %1426
  %1428 = vrot.lane.b32.xlu0 %v1341, 16
  %v1429 = vpop.permute.xlu0 %1428
  %1430 = vrot.lane.b32.xlu0 %v1345, 16
  %v1431 = vpop.permute.xlu0 %1430
  %1432 = vrot.lane.b32.xlu0 %v1349, 16
  %v1433 = vpop.permute.xlu0 %1432
  %1434 = vrot.lane.b32.xlu0 %v1353, 16
  %v1435 = vpop.permute.xlu0 %1434
  %1436 = vrot.lane.b32.xlu0 %v1342, 16
  %v1437 = vpop.permute.xlu0 %1436
  %1438 = vrot.lane.b32.xlu0 %v1346, 16
  %v1439 = vpop.permute.xlu0 %1438
  %1440 = vrot.lane.b32.xlu0 %v1350, 16
  %v1441 = vpop.permute.xlu0 %1440
  %1442 = vrot.lane.b32.xlu0 %v1354, 16
  %v1443 = vpop.permute.xlu0 %1442
  %1444 = vrot.lane.b32.xlu0 %v1343, 16
  %v1445 = vpop.permute.xlu0 %1444
  %1446 = vrot.lane.b32.xlu0 %v1347, 16
  %v1447 = vpop.permute.xlu0 %1446
  %1448 = vrot.lane.b32.xlu0 %v1351, 16
  %v1449 = vpop.permute.xlu0 %1448
  %1450 = vrot.lane.b32.xlu0 %v1355, 16
  %v1451 = vpop.permute.xlu0 %1450
  %v1452 = vsel %vm70, %v1437, %v1445
  %v1453 = vsel %vm70, %v1439, %v1447
  %v1454 = vsel %vm70, %v1441, %v1449
  %v1455 = vsel %vm70, %v1443, %v1451
  %v1456 = vsel %vm70, %v1429, %v1437
  %v1457 = vsel %vm70, %v1431, %v1439
  %v1458 = vsel %vm70, %v1433, %v1441
  %v1459 = vsel %vm70, %v1435, %v1443
  %v1460 = vsel %vm70, %v1421, %v1429
  %v1461 = vsel %vm70, %v1423, %v1431
  %v1462 = vsel %vm70, %v1425, %v1433
  %v1463 = vsel %vm70, %v1427, %v1435
  %v1464 = vsel %vm70, %v1445, %v1421
  %v1465 = vsel %vm70, %v1447, %v1423
  %v1466 = vsel %vm70, %v1449, %v1425
  %v1467 = vsel %vm70, %v1451, %v1427
  %v1468 = vmul.f32 %v1464, %v78
  %v1469 = vmul.f32 %v1460, %v79
  %v1470 = vmul.f32 %v1456, %v80
  %v1471 = vmul.f32 %v1452, %v81
  %v1472 = vmul.f32 %v1465, %v78
  %v1473 = vmul.f32 %v1461, %v79
  %v1474 = vmul.f32 %v1457, %v80
  %v1475 = vmul.f32 %v1453, %v81
  %v1476 = vmul.f32 %v1466, %v78
  %v1477 = vmul.f32 %v1462, %v79
  %v1478 = vmul.f32 %v1458, %v80
  %v1479 = vmul.f32 %v1454, %v81
  %v1480 = vmul.f32 %v1467, %v78
  %v1481 = vmul.f32 %v1463, %v79
  %v1482 = vmul.f32 %v1459, %v80
  %v1483 = vmul.f32 %v1455, %v81
  %1484 = vrot.lane.b32.xlu0 %v1340, 15
  %v1485 = vpop.permute.xlu0 %1484
  %1486 = vrot.lane.b32.xlu0 %v1344, 15
  %v1487 = vpop.permute.xlu0 %1486
  %1488 = vrot.lane.b32.xlu0 %v1348, 15
  %v1489 = vpop.permute.xlu0 %1488
  %1490 = vrot.lane.b32.xlu0 %v1352, 15
  %v1491 = vpop.permute.xlu0 %1490
  %1492 = vrot.lane.b32.xlu0 %v1341, 15
  %v1493 = vpop.permute.xlu0 %1492
  %1494 = vrot.lane.b32.xlu0 %v1345, 15
  %v1495 = vpop.permute.xlu0 %1494
  %1496 = vrot.lane.b32.xlu0 %v1349, 15
  %v1497 = vpop.permute.xlu0 %1496
  %1498 = vrot.lane.b32.xlu0 %v1353, 15
  %v1499 = vpop.permute.xlu0 %1498
  %1500 = vrot.lane.b32.xlu0 %v1342, 15
  %v1501 = vpop.permute.xlu0 %1500
  %1502 = vrot.lane.b32.xlu0 %v1346, 15
  %v1503 = vpop.permute.xlu0 %1502
  %1504 = vrot.lane.b32.xlu0 %v1350, 15
  %v1505 = vpop.permute.xlu0 %1504
  %1506 = vrot.lane.b32.xlu0 %v1354, 15
  %v1507 = vpop.permute.xlu0 %1506
  %1508 = vrot.lane.b32.xlu0 %v1343, 15
  %v1509 = vpop.permute.xlu0 %1508
  %1510 = vrot.lane.b32.xlu0 %v1347, 15
  %v1511 = vpop.permute.xlu0 %1510
  %1512 = vrot.lane.b32.xlu0 %v1351, 15
  %v1513 = vpop.permute.xlu0 %1512
  %1514 = vrot.lane.b32.xlu0 %v1355, 15
  %v1515 = vpop.permute.xlu0 %1514
  %v1516 = vsel %vm98, %v1501, %v1509
  %v1517 = vsel %vm98, %v1503, %v1511
  %v1518 = vsel %vm98, %v1505, %v1513
  %v1519 = vsel %vm98, %v1507, %v1515
  %v1520 = vsel %vm98, %v1493, %v1501
  %v1521 = vsel %vm98, %v1495, %v1503
  %v1522 = vsel %vm98, %v1497, %v1505
  %v1523 = vsel %vm98, %v1499, %v1507
  %v1524 = vsel %vm98, %v1485, %v1493
  %v1525 = vsel %vm98, %v1487, %v1495
  %v1526 = vsel %vm98, %v1489, %v1497
  %v1527 = vsel %vm98, %v1491, %v1499
  %v1528 = vsel %vm98, %v1509, %v1485
  %v1529 = vsel %vm98, %v1511, %v1487
  %v1530 = vsel %vm98, %v1513, %v1489
  %v1531 = vsel %vm98, %v1515, %v1491
  %v1532 = vmul.f32 %v1528, %v106
  %v1533 = vmul.f32 %v1524, %v107
  %v1534 = vmul.f32 %v1520, %v108
  %v1535 = vmul.f32 %v1516, %v109
  %v1536 = vmul.f32 %v1529, %v106
  %v1537 = vmul.f32 %v1525, %v107
  %v1538 = vmul.f32 %v1521, %v108
  %v1539 = vmul.f32 %v1517, %v109
  %v1540 = vmul.f32 %v1530, %v106
  %v1541 = vmul.f32 %v1526, %v107
  %v1542 = vmul.f32 %v1522, %v108
  %v1543 = vmul.f32 %v1518, %v109
  %v1544 = vmul.f32 %v1531, %v106
  %v1545 = vmul.f32 %v1527, %v107
  %v1546 = vmul.f32 %v1523, %v108
  %v1547 = vmul.f32 %v1519, %v109
  %1548 = vrot.lane.b32.xlu0 %v1340, 1
  %v1549 = vpop.permute.xlu0 %1548
  %1550 = vrot.lane.b32.xlu0 %v1344, 1
  %v1551 = vpop.permute.xlu0 %1550
  %1552 = vrot.lane.b32.xlu0 %v1348, 1
  %v1553 = vpop.permute.xlu0 %1552
  %1554 = vrot.lane.b32.xlu0 %v1352, 1
  %v1555 = vpop.permute.xlu0 %1554
  %1556 = vrot.lane.b32.xlu0 %v1341, 1
  %v1557 = vpop.permute.xlu0 %1556
  %1558 = vrot.lane.b32.xlu0 %v1345, 1
  %v1559 = vpop.permute.xlu0 %1558
  %1560 = vrot.lane.b32.xlu0 %v1349, 1
  %v1561 = vpop.permute.xlu0 %1560
  %1562 = vrot.lane.b32.xlu0 %v1353, 1
  %v1563 = vpop.permute.xlu0 %1562
  %1564 = vrot.lane.b32.xlu0 %v1342, 1
  %v1565 = vpop.permute.xlu0 %1564
  %1566 = vrot.lane.b32.xlu0 %v1346, 1
  %v1567 = vpop.permute.xlu0 %1566
  %1568 = vrot.lane.b32.xlu0 %v1350, 1
  %v1569 = vpop.permute.xlu0 %1568
  %1570 = vrot.lane.b32.xlu0 %v1354, 1
  %v1571 = vpop.permute.xlu0 %1570
  %1572 = vrot.lane.b32.xlu0 %v1343, 1
  %v1573 = vpop.permute.xlu0 %1572
  %1574 = vrot.lane.b32.xlu0 %v1347, 1
  %v1575 = vpop.permute.xlu0 %1574
  %1576 = vrot.lane.b32.xlu0 %v1351, 1
  %v1577 = vpop.permute.xlu0 %1576
  %1578 = vrot.lane.b32.xlu0 %v1355, 1
  %v1579 = vpop.permute.xlu0 %1578
  %v1580 = vsel %vm126, %v1565, %v1573
  %v1581 = vsel %vm126, %v1567, %v1575
  %v1582 = vsel %vm126, %v1569, %v1577
  %v1583 = vsel %vm126, %v1571, %v1579
  %v1584 = vsel %vm126, %v1557, %v1565
  %v1585 = vsel %vm126, %v1559, %v1567
  %v1586 = vsel %vm126, %v1561, %v1569
  %v1587 = vsel %vm126, %v1563, %v1571
  %v1588 = vsel %vm126, %v1549, %v1557
  %v1589 = vsel %vm126, %v1551, %v1559
  %v1590 = vsel %vm126, %v1553, %v1561
  %v1591 = vsel %vm126, %v1555, %v1563
  %v1592 = vsel %vm126, %v1573, %v1549
  %v1593 = vsel %vm126, %v1575, %v1551
  %v1594 = vsel %vm126, %v1577, %v1553
  %v1595 = vsel %vm126, %v1579, %v1555
  %v1596 = vmul.f32 %v1592, %v134
  %v1597 = vmul.f32 %v1588, %v135
  %v1598 = vmul.f32 %v1584, %v136
  %v1599 = vmul.f32 %v1580, %v137
  %v1600 = vmul.f32 %v1593, %v134
  %v1601 = vmul.f32 %v1589, %v135
  %v1602 = vmul.f32 %v1585, %v136
  %v1603 = vmul.f32 %v1581, %v137
  %v1604 = vmul.f32 %v1594, %v134
  %v1605 = vmul.f32 %v1590, %v135
  %v1606 = vmul.f32 %v1586, %v136
  %v1607 = vmul.f32 %v1582, %v137
  %v1608 = vmul.f32 %v1595, %v134
  %v1609 = vmul.f32 %v1591, %v135
  %v1610 = vmul.f32 %v1587, %v136
  %v1611 = vmul.f32 %v1583, %v137
  %1612 = vrot.lane.b32.xlu0 %v1340, 127
  %v1613 = vpop.permute.xlu0 %1612
  %1614 = vrot.lane.b32.xlu0 %v1344, 127
  %v1615 = vpop.permute.xlu0 %1614
  %1616 = vrot.lane.b32.xlu0 %v1348, 127
  %v1617 = vpop.permute.xlu0 %1616
  %1618 = vrot.lane.b32.xlu0 %v1352, 127
  %v1619 = vpop.permute.xlu0 %1618
  %1620 = vrot.lane.b32.xlu0 %v1341, 127
  %v1621 = vpop.permute.xlu0 %1620
  %1622 = vrot.lane.b32.xlu0 %v1345, 127
  %v1623 = vpop.permute.xlu0 %1622
  %1624 = vrot.lane.b32.xlu0 %v1349, 127
  %v1625 = vpop.permute.xlu0 %1624
  %1626 = vrot.lane.b32.xlu0 %v1353, 127
  %v1627 = vpop.permute.xlu0 %1626
  %1628 = vrot.lane.b32.xlu0 %v1342, 127
  %v1629 = vpop.permute.xlu0 %1628
  %1630 = vrot.lane.b32.xlu0 %v1346, 127
  %v1631 = vpop.permute.xlu0 %1630
  %1632 = vrot.lane.b32.xlu0 %v1350, 127
  %v1633 = vpop.permute.xlu0 %1632
  %1634 = vrot.lane.b32.xlu0 %v1354, 127
  %v1635 = vpop.permute.xlu0 %1634
  %1636 = vrot.lane.b32.xlu0 %v1343, 127
  %v1637 = vpop.permute.xlu0 %1636
  %1638 = vrot.lane.b32.xlu0 %v1347, 127
  %v1639 = vpop.permute.xlu0 %1638
  %1640 = vrot.lane.b32.xlu0 %v1351, 127
  %v1641 = vpop.permute.xlu0 %1640
  %1642 = vrot.lane.b32.xlu0 %v1355, 127
  %v1643 = vpop.permute.xlu0 %1642
  %v1644 = vsel %vm154, %v1629, %v1637
  %v1645 = vsel %vm154, %v1631, %v1639
  %v1646 = vsel %vm154, %v1633, %v1641
  %v1647 = vsel %vm154, %v1635, %v1643
  %v1648 = vsel %vm154, %v1621, %v1629
  %v1649 = vsel %vm154, %v1623, %v1631
  %v1650 = vsel %vm154, %v1625, %v1633
  %v1651 = vsel %vm154, %v1627, %v1635
  %v1652 = vsel %vm154, %v1613, %v1621
  %v1653 = vsel %vm154, %v1615, %v1623
  %v1654 = vsel %vm154, %v1617, %v1625
  %v1655 = vsel %vm154, %v1619, %v1627
  %v1656 = vsel %vm154, %v1637, %v1613
  %v1657 = vsel %vm154, %v1639, %v1615
  %v1658 = vsel %vm154, %v1641, %v1617
  %v1659 = vsel %vm154, %v1643, %v1619
  %v1660 = vmul.f32 %v1652, %v162
  %v1661 = vmul.f32 %v1648, %v163
  %v1662 = vmul.f32 %v1644, %v164
  %v1663 = vmul.f32 %v1656, %v165
  %v1664 = vmul.f32 %v1653, %v162
  %v1665 = vmul.f32 %v1649, %v163
  %v1666 = vmul.f32 %v1645, %v164
  %v1667 = vmul.f32 %v1657, %v165
  %v1668 = vmul.f32 %v1654, %v162
  %v1669 = vmul.f32 %v1650, %v163
  %v1670 = vmul.f32 %v1646, %v164
  %v1671 = vmul.f32 %v1658, %v165
  %v1672 = vmul.f32 %v1655, %v162
  %v1673 = vmul.f32 %v1651, %v163
  %v1674 = vmul.f32 %v1647, %v164
  %v1675 = vmul.f32 %v1659, %v165
  %1676 = vrot.lane.b32.xlu0 %v1340, 113
  %v1677 = vpop.permute.xlu0 %1676
  %1678 = vrot.lane.b32.xlu0 %v1344, 113
  %v1679 = vpop.permute.xlu0 %1678
  %1680 = vrot.lane.b32.xlu0 %v1348, 113
  %v1681 = vpop.permute.xlu0 %1680
  %1682 = vrot.lane.b32.xlu0 %v1352, 113
  %v1683 = vpop.permute.xlu0 %1682
  %1684 = vrot.lane.b32.xlu0 %v1341, 113
  %v1685 = vpop.permute.xlu0 %1684
  %1686 = vrot.lane.b32.xlu0 %v1345, 113
  %v1687 = vpop.permute.xlu0 %1686
  %1688 = vrot.lane.b32.xlu0 %v1349, 113
  %v1689 = vpop.permute.xlu0 %1688
  %1690 = vrot.lane.b32.xlu0 %v1353, 113
  %v1691 = vpop.permute.xlu0 %1690
  %1692 = vrot.lane.b32.xlu0 %v1342, 113
  %v1693 = vpop.permute.xlu0 %1692
  %1694 = vrot.lane.b32.xlu0 %v1346, 113
  %v1695 = vpop.permute.xlu0 %1694
  %1696 = vrot.lane.b32.xlu0 %v1350, 113
  %v1697 = vpop.permute.xlu0 %1696
  %1698 = vrot.lane.b32.xlu0 %v1354, 113
  %v1699 = vpop.permute.xlu0 %1698
  %1700 = vrot.lane.b32.xlu0 %v1343, 113
  %v1701 = vpop.permute.xlu0 %1700
  %1702 = vrot.lane.b32.xlu0 %v1347, 113
  %v1703 = vpop.permute.xlu0 %1702
  %1704 = vrot.lane.b32.xlu0 %v1351, 113
  %v1705 = vpop.permute.xlu0 %1704
  %1706 = vrot.lane.b32.xlu0 %v1355, 113
  %v1707 = vpop.permute.xlu0 %1706
  %v1708 = vsel %vm182, %v1693, %v1701
  %v1709 = vsel %vm182, %v1695, %v1703
  %v1710 = vsel %vm182, %v1697, %v1705
  %v1711 = vsel %vm182, %v1699, %v1707
  %v1712 = vsel %vm182, %v1685, %v1693
  %v1713 = vsel %vm182, %v1687, %v1695
  %v1714 = vsel %vm182, %v1689, %v1697
  %v1715 = vsel %vm182, %v1691, %v1699
  %v1716 = vsel %vm182, %v1677, %v1685
  %v1717 = vsel %vm182, %v1679, %v1687
  %v1718 = vsel %vm182, %v1681, %v1689
  %v1719 = vsel %vm182, %v1683, %v1691
  %v1720 = vsel %vm182, %v1701, %v1677
  %v1721 = vsel %vm182, %v1703, %v1679
  %v1722 = vsel %vm182, %v1705, %v1681
  %v1723 = vsel %vm182, %v1707, %v1683
  %v1724 = vmul.f32 %v1716, %v190
  %v1725 = vmul.f32 %v1712, %v191
  %v1726 = vmul.f32 %v1708, %v192
  %v1727 = vmul.f32 %v1720, %v193
  %v1728 = vmul.f32 %v1717, %v190
  %v1729 = vmul.f32 %v1713, %v191
  %v1730 = vmul.f32 %v1709, %v192
  %v1731 = vmul.f32 %v1721, %v193
  %v1732 = vmul.f32 %v1718, %v190
  %v1733 = vmul.f32 %v1714, %v191
  %v1734 = vmul.f32 %v1710, %v192
  %v1735 = vmul.f32 %v1722, %v193
  %v1736 = vmul.f32 %v1719, %v190
  %v1737 = vmul.f32 %v1715, %v191
  %v1738 = vmul.f32 %v1711, %v192
  %v1739 = vmul.f32 %v1723, %v193
  %1740 = vrot.lane.b32.xlu0 %v1340, 112
  %v1741 = vpop.permute.xlu0 %1740
  %1742 = vrot.lane.b32.xlu0 %v1344, 112
  %v1743 = vpop.permute.xlu0 %1742
  %1744 = vrot.lane.b32.xlu0 %v1348, 112
  %v1745 = vpop.permute.xlu0 %1744
  %1746 = vrot.lane.b32.xlu0 %v1352, 112
  %v1747 = vpop.permute.xlu0 %1746
  %1748 = vrot.lane.b32.xlu0 %v1341, 112
  %v1749 = vpop.permute.xlu0 %1748
  %1750 = vrot.lane.b32.xlu0 %v1345, 112
  %v1751 = vpop.permute.xlu0 %1750
  %1752 = vrot.lane.b32.xlu0 %v1349, 112
  %v1753 = vpop.permute.xlu0 %1752
  %1754 = vrot.lane.b32.xlu0 %v1353, 112
  %v1755 = vpop.permute.xlu0 %1754
  %1756 = vrot.lane.b32.xlu0 %v1342, 112
  %v1757 = vpop.permute.xlu0 %1756
  %1758 = vrot.lane.b32.xlu0 %v1346, 112
  %v1759 = vpop.permute.xlu0 %1758
  %1760 = vrot.lane.b32.xlu0 %v1350, 112
  %v1761 = vpop.permute.xlu0 %1760
  %1762 = vrot.lane.b32.xlu0 %v1354, 112
  %v1763 = vpop.permute.xlu0 %1762
  %1764 = vrot.lane.b32.xlu0 %v1343, 112
  %v1765 = vpop.permute.xlu0 %1764
  %1766 = vrot.lane.b32.xlu0 %v1347, 112
  %v1767 = vpop.permute.xlu0 %1766
  %1768 = vrot.lane.b32.xlu0 %v1351, 112
  %v1769 = vpop.permute.xlu0 %1768
  %1770 = vrot.lane.b32.xlu0 %v1355, 112
  %v1771 = vpop.permute.xlu0 %1770
  %v1772 = vsel %vm210, %v1757, %v1765
  %v1773 = vsel %vm210, %v1759, %v1767
  %v1774 = vsel %vm210, %v1761, %v1769
  %v1775 = vsel %vm210, %v1763, %v1771
  %v1776 = vsel %vm210, %v1749, %v1757
  %v1777 = vsel %vm210, %v1751, %v1759
  %v1778 = vsel %vm210, %v1753, %v1761
  %v1779 = vsel %vm210, %v1755, %v1763
  %v1780 = vsel %vm210, %v1741, %v1749
  %v1781 = vsel %vm210, %v1743, %v1751
  %v1782 = vsel %vm210, %v1745, %v1753
  %v1783 = vsel %vm210, %v1747, %v1755
  %v1784 = vsel %vm210, %v1765, %v1741
  %v1785 = vsel %vm210, %v1767, %v1743
  %v1786 = vsel %vm210, %v1769, %v1745
  %v1787 = vsel %vm210, %v1771, %v1747
  %v1788 = vmul.f32 %v1780, %v218
  %v1789 = vmul.f32 %v1776, %v219
  %v1790 = vmul.f32 %v1772, %v220
  %v1791 = vmul.f32 %v1784, %v221
  %v1792 = vmul.f32 %v1781, %v218
  %v1793 = vmul.f32 %v1777, %v219
  %v1794 = vmul.f32 %v1773, %v220
  %v1795 = vmul.f32 %v1785, %v221
  %v1796 = vmul.f32 %v1782, %v218
  %v1797 = vmul.f32 %v1778, %v219
  %v1798 = vmul.f32 %v1774, %v220
  %v1799 = vmul.f32 %v1786, %v221
  %v1800 = vmul.f32 %v1783, %v218
  %v1801 = vmul.f32 %v1779, %v219
  %v1802 = vmul.f32 %v1775, %v220
  %v1803 = vmul.f32 %v1787, %v221
  %1804 = vrot.lane.b32.xlu0 %v1340, 111
  %v1805 = vpop.permute.xlu0 %1804
  %1806 = vrot.lane.b32.xlu0 %v1344, 111
  %v1807 = vpop.permute.xlu0 %1806
  %1808 = vrot.lane.b32.xlu0 %v1348, 111
  %v1809 = vpop.permute.xlu0 %1808
  %1810 = vrot.lane.b32.xlu0 %v1352, 111
  %v1811 = vpop.permute.xlu0 %1810
  %1812 = vrot.lane.b32.xlu0 %v1341, 111
  %v1813 = vpop.permute.xlu0 %1812
  %1814 = vrot.lane.b32.xlu0 %v1345, 111
  %v1815 = vpop.permute.xlu0 %1814
  %1816 = vrot.lane.b32.xlu0 %v1349, 111
  %v1817 = vpop.permute.xlu0 %1816
  %1818 = vrot.lane.b32.xlu0 %v1353, 111
  %v1819 = vpop.permute.xlu0 %1818
  %1820 = vrot.lane.b32.xlu0 %v1342, 111
  %v1821 = vpop.permute.xlu0 %1820
  %1822 = vrot.lane.b32.xlu0 %v1346, 111
  %v1823 = vpop.permute.xlu0 %1822
  %1824 = vrot.lane.b32.xlu0 %v1350, 111
  %v1825 = vpop.permute.xlu0 %1824
  %1826 = vrot.lane.b32.xlu0 %v1354, 111
  %v1827 = vpop.permute.xlu0 %1826
  %1828 = vrot.lane.b32.xlu0 %v1343, 111
  %v1829 = vpop.permute.xlu0 %1828
  %1830 = vrot.lane.b32.xlu0 %v1347, 111
  %v1831 = vpop.permute.xlu0 %1830
  %1832 = vrot.lane.b32.xlu0 %v1351, 111
  %v1833 = vpop.permute.xlu0 %1832
  %1834 = vrot.lane.b32.xlu0 %v1355, 111
  %v1835 = vpop.permute.xlu0 %1834
  %v1836 = vsel %vm238, %v1821, %v1829
  %v1837 = vsel %vm238, %v1823, %v1831
  %v1838 = vsel %vm238, %v1825, %v1833
  %v1839 = vsel %vm238, %v1827, %v1835
  %v1840 = vsel %vm238, %v1813, %v1821
  %v1841 = vsel %vm238, %v1815, %v1823
  %v1842 = vsel %vm238, %v1817, %v1825
  %v1843 = vsel %vm238, %v1819, %v1827
  %v1844 = vsel %vm238, %v1805, %v1813
  %v1845 = vsel %vm238, %v1807, %v1815
  %v1846 = vsel %vm238, %v1809, %v1817
  %v1847 = vsel %vm238, %v1811, %v1819
  %v1848 = vsel %vm238, %v1829, %v1805
  %v1849 = vsel %vm238, %v1831, %v1807
  %v1850 = vsel %vm238, %v1833, %v1809
  %v1851 = vsel %vm238, %v1835, %v1811
  %v1852 = vmul.f32 %v1844, %v246
  %v1853 = vmul.f32 %v1840, %v247
  %v1854 = vmul.f32 %v1836, %v248
  %v1855 = vmul.f32 %v1848, %v249
  %v1856 = vmul.f32 %v1845, %v246
  %v1857 = vmul.f32 %v1841, %v247
  %v1858 = vmul.f32 %v1837, %v248
  %v1859 = vmul.f32 %v1849, %v249
  %v1860 = vmul.f32 %v1846, %v246
  %v1861 = vmul.f32 %v1842, %v247
  %v1862 = vmul.f32 %v1838, %v248
  %v1863 = vmul.f32 %v1850, %v249
  %v1864 = vmul.f32 %v1847, %v246
  %v1865 = vmul.f32 %v1843, %v247
  %v1866 = vmul.f32 %v1839, %v248
  %v1867 = vmul.f32 %v1851, %v249
  %v1868 = vld [vmem:[%s6] sm:$0xff]
  %v1869 = vld [vmem:[%s6 + $0x8] sm:$0xff]
  %v1870 = vld [vmem:[%s6 + $0x10] sm:$0xff]
  %v1871 = vld [vmem:[%s6 + $0x18] sm:$0xff]
  %v1872 = vld [vmem:[%s6 + $0x20] sm:$0xff]
  %v1873 = vld [vmem:[%s6 + $0x28] sm:$0xff]
  %v1874 = vld [vmem:[%s6 + $0x30] sm:$0xff]
  %v1875 = vld [vmem:[%s6 + $0x38] sm:$0xff]
  %v1876 = vld [vmem:[%s6 + $0x40] sm:$0xff]
  %v1877 = vld [vmem:[%s6 + $0x48] sm:$0xff]
  %v1878 = vld [vmem:[%s6 + $0x50] sm:$0xff]
  %v1879 = vld [vmem:[%s6 + $0x58] sm:$0xff]
  %v1880 = vld [vmem:[%s7] sm:$0xff]
  %v1881 = vld [vmem:[%s7 + $0x8] sm:$0xff]
  %v1882 = vld [vmem:[%s7 + $0x10] sm:$0xff]
  %v1883 = vld [vmem:[%s7 + $0x18] sm:$0xff]
  %1885 = vset.pattern.permute.xlu0 0
  %1886 = vperm.xlu0 %1885, %v1880
  %v1887 = vpop.permute.xlu0 %1886
  %1890 = vset.pattern.permute.xlu0 0
  %1891 = vperm.xlu0 %1890, %v1881
  %v1892 = vpop.permute.xlu0 %1891
  %1895 = vset.pattern.permute.xlu0 0
  %1896 = vperm.xlu0 %1895, %v1882
  %v1897 = vpop.permute.xlu0 %1896
  %1900 = vset.pattern.permute.xlu0 0
  %1901 = vperm.xlu0 %1900, %v1883
  %v1902 = vpop.permute.xlu0 %1901
  %v1905 = vsel %vm979, %v1870, 0
  %v1908 = vsel %vm979, %v1873, 0
  %v1911 = vsel %vm979, %v1876, 0
  %v1914 = vsel %vm979, %v1879, 0
  %1916 = vmatpush.msra.mxu0 %v1608
  %1917 = vmatpush.msra.mxu0 %v1604
  %1918 = vmatpush.msra.mxu0 %v1600
  %1919 = vmatpush.msra.mxu0 %v1596
  %1920 = vmatpush.msra.mxu0 %v1544
  %1921 = vmatpush.msra.mxu0 %v1540
  %1922 = vmatpush.msra.mxu0 %v1536
  %1923 = vmatpush.msra.mxu0 %v1532
  %1924 = vmatpush.msra.mxu0 %v1480
  %1925 = vmatpush.msra.mxu0 %v1476
  %1926 = vmatpush.msra.mxu0 %v1472
  %1927 = vmatpush.msra.mxu0 %v1468
  %1928 = vmatpush.msra.mxu0 %v1416
  %1929 = vmatpush.msra.mxu0 %v1412
  %1930 = vmatpush.msra.mxu0 %v1408
  %1931 = vmatpush.msra.mxu0 %v1404
  %1932 = vmatmul.f32.gmra.mxu0 %v1868
  %v1933 = vpop.f32.mrf.mxu0
  %v1934 = vadd.f32 %v1887, %v1933
  %1935 = vmatmul.f32.gmra.mxu0 %v1871
  %v1936 = vpop.f32.mrf.mxu0
  %v1937 = vadd.f32 %v1892, %v1936
  %1938 = vmatmul.f32.gmra.mxu0 %v1874
  %v1939 = vpop.f32.mrf.mxu0
  %v1940 = vadd.f32 %v1897, %v1939
  %1941 = vmatmul.f32.gmra.mxu0 %v1877
  %v1942 = vpop.f32.mrf.mxu0
  %v1943 = vadd.f32 %v1902, %v1942
  %1944 = vdwg.mxu0
  %1945 = vmatpush.msra.mxu0 %v1800
  %1946 = vmatpush.msra.mxu0 %v1796
  %1947 = vmatpush.msra.mxu0 %v1792
  %1948 = vmatpush.msra.mxu0 %v1788
  %1949 = vmatpush.msra.mxu0 %v1736
  %1950 = vmatpush.msra.mxu0 %v1732
  %1951 = vmatpush.msra.mxu0 %v1728
  %1952 = vmatpush.msra.mxu0 %v1724
  %1953 = vmatpush.msra.mxu0 %v1672
  %1954 = vmatpush.msra.mxu0 %v1668
  %1955 = vmatpush.msra.mxu0 %v1664
  %1956 = vmatpush.msra.mxu0 %v1660
  %1957 = vmatpush.msra.mxu0 %v1352
  %1958 = vmatpush.msra.mxu0 %v1348
  %1959 = vmatpush.msra.mxu0 %v1344
  %1960 = vmatpush.msra.mxu0 %v1340
  %1961 = vmatmul.f32.gmra.mxu0 %v1869
  %v1962 = vpop.f32.mrf.mxu0
  %v1963 = vadd.f32 %v1934, %v1962
  %1964 = vmatmul.f32.gmra.mxu0 %v1872
  %v1965 = vpop.f32.mrf.mxu0
  %v1966 = vadd.f32 %v1937, %v1965
  %1967 = vmatmul.f32.gmra.mxu0 %v1875
  %v1968 = vpop.f32.mrf.mxu0
  %v1969 = vadd.f32 %v1940, %v1968
  %1970 = vmatmul.f32.gmra.mxu0 %v1878
  %v1971 = vpop.f32.mrf.mxu0
  %v1972 = vadd.f32 %v1943, %v1971
  %1973 = vdwg.mxu0
  %1974 = vmatpush.msra.mxu0 0.0
  %1975 = vmatpush.msra.mxu0 0.0
  %1976 = vmatpush.msra.mxu0 0.0
  %1977 = vmatpush.msra.mxu0 0.0
  %1978 = vmatpush.msra.mxu0 0.0
  %1979 = vmatpush.msra.mxu0 0.0
  %1980 = vmatpush.msra.mxu0 0.0
  %1981 = vmatpush.msra.mxu0 0.0
  %1982 = vmatpush.msra.mxu0 0.0
  %1983 = vmatpush.msra.mxu0 0.0
  %1984 = vmatpush.msra.mxu0 0.0
  %1985 = vmatpush.msra.mxu0 0.0
  %1986 = vmatpush.msra.mxu0 %v1864
  %1987 = vmatpush.msra.mxu0 %v1860
  %1988 = vmatpush.msra.mxu0 %v1856
  %1989 = vmatpush.msra.mxu0 %v1852
  %1990 = vmatmul.f32.gmra.mxu0 %v1905
  %v1991 = vpop.f32.mrf.mxu0
  %v1992 = vadd.f32 %v1963, %v1991
  %1993 = vmatmul.f32.gmra.mxu0 %v1908
  %v1994 = vpop.f32.mrf.mxu0
  %v1995 = vadd.f32 %v1966, %v1994
  %1996 = vmatmul.f32.gmra.mxu0 %v1911
  %v1997 = vpop.f32.mrf.mxu0
  %v1998 = vadd.f32 %v1969, %v1997
  %1999 = vmatmul.f32.gmra.mxu0 %v1914
  %v2000 = vpop.f32.mrf.mxu0
  %v2001 = vadd.f32 %v1972, %v2000
  %2002 = vdwg.mxu0
  %2003 = vmatpush.msra.mxu0 %v1609
  %2004 = vmatpush.msra.mxu0 %v1605
  %2005 = vmatpush.msra.mxu0 %v1601
  %2006 = vmatpush.msra.mxu0 %v1597
  %2007 = vmatpush.msra.mxu0 %v1545
  %2008 = vmatpush.msra.mxu0 %v1541
  %2009 = vmatpush.msra.mxu0 %v1537
  %2010 = vmatpush.msra.mxu0 %v1533
  %2011 = vmatpush.msra.mxu0 %v1481
  %2012 = vmatpush.msra.mxu0 %v1477
  %2013 = vmatpush.msra.mxu0 %v1473
  %2014 = vmatpush.msra.mxu0 %v1469
  %2015 = vmatpush.msra.mxu0 %v1417
  %2016 = vmatpush.msra.mxu0 %v1413
  %2017 = vmatpush.msra.mxu0 %v1409
  %2018 = vmatpush.msra.mxu0 %v1405
  %2019 = vmatmul.f32.gmra.mxu0 %v1868
  %v2020 = vpop.f32.mrf.mxu0
  %v2021 = vadd.f32 %v1887, %v2020
  %2022 = vmatmul.f32.gmra.mxu0 %v1871
  %v2023 = vpop.f32.mrf.mxu0
  %v2024 = vadd.f32 %v1892, %v2023
  %2025 = vmatmul.f32.gmra.mxu0 %v1874
  %v2026 = vpop.f32.mrf.mxu0
  %v2027 = vadd.f32 %v1897, %v2026
  %2028 = vmatmul.f32.gmra.mxu0 %v1877
  %v2029 = vpop.f32.mrf.mxu0
  %v2030 = vadd.f32 %v1902, %v2029
  %2031 = vdwg.mxu0
  %2032 = vmatpush.msra.mxu0 %v1801
  %2033 = vmatpush.msra.mxu0 %v1797
  %2034 = vmatpush.msra.mxu0 %v1793
  %2035 = vmatpush.msra.mxu0 %v1789
  %2036 = vmatpush.msra.mxu0 %v1737
  %2037 = vmatpush.msra.mxu0 %v1733
  %2038 = vmatpush.msra.mxu0 %v1729
  %2039 = vmatpush.msra.mxu0 %v1725
  %2040 = vmatpush.msra.mxu0 %v1673
  %2041 = vmatpush.msra.mxu0 %v1669
  %2042 = vmatpush.msra.mxu0 %v1665
  %2043 = vmatpush.msra.mxu0 %v1661
  %2044 = vmatpush.msra.mxu0 %v1353
  %2045 = vmatpush.msra.mxu0 %v1349
  %2046 = vmatpush.msra.mxu0 %v1345
  %2047 = vmatpush.msra.mxu0 %v1341
  %2048 = vmatmul.f32.gmra.mxu0 %v1869
  %v2049 = vpop.f32.mrf.mxu0
  %v2050 = vadd.f32 %v2021, %v2049
  %2051 = vmatmul.f32.gmra.mxu0 %v1872
  %v2052 = vpop.f32.mrf.mxu0
  %v2053 = vadd.f32 %v2024, %v2052
  %2054 = vmatmul.f32.gmra.mxu0 %v1875
  %v2055 = vpop.f32.mrf.mxu0
  %v2056 = vadd.f32 %v2027, %v2055
  %2057 = vmatmul.f32.gmra.mxu0 %v1878
  %v2058 = vpop.f32.mrf.mxu0
  %v2059 = vadd.f32 %v2030, %v2058
  %2060 = vdwg.mxu0
  %2061 = vmatpush.msra.mxu0 0.0
  %2062 = vmatpush.msra.mxu0 0.0
  %2063 = vmatpush.msra.mxu0 0.0
  %2064 = vmatpush.msra.mxu0 0.0
  %2065 = vmatpush.msra.mxu0 0.0
  %2066 = vmatpush.msra.mxu0 0.0
  %2067 = vmatpush.msra.mxu0 0.0
  %2068 = vmatpush.msra.mxu0 0.0
  %2069 = vmatpush.msra.mxu0 0.0
  %2070 = vmatpush.msra.mxu0 0.0
  %2071 = vmatpush.msra.mxu0 0.0
  %2072 = vmatpush.msra.mxu0 0.0
  %2073 = vmatpush.msra.mxu0 %v1865
  %2074 = vmatpush.msra.mxu0 %v1861
  %2075 = vmatpush.msra.mxu0 %v1857
  %2076 = vmatpush.msra.mxu0 %v1853
  %2077 = vmatmul.f32.gmra.mxu0 %v1905
  %v2078 = vpop.f32.mrf.mxu0
  %v2079 = vadd.f32 %v2050, %v2078
  %2080 = vmatmul.f32.gmra.mxu0 %v1908
  %v2081 = vpop.f32.mrf.mxu0
  %v2082 = vadd.f32 %v2053, %v2081
  %2083 = vmatmul.f32.gmra.mxu0 %v1911
  %v2084 = vpop.f32.mrf.mxu0
  %v2085 = vadd.f32 %v2056, %v2084
  %2086 = vmatmul.f32.gmra.mxu0 %v1914
  %v2087 = vpop.f32.mrf.mxu0
  %v2088 = vadd.f32 %v2059, %v2087
  %2089 = vdwg.mxu0
  %2090 = vmatpush.msra.mxu0 %v1610
  %2091 = vmatpush.msra.mxu0 %v1606
  %2092 = vmatpush.msra.mxu0 %v1602
  %2093 = vmatpush.msra.mxu0 %v1598
  %2094 = vmatpush.msra.mxu0 %v1546
  %2095 = vmatpush.msra.mxu0 %v1542
  %2096 = vmatpush.msra.mxu0 %v1538
  %2097 = vmatpush.msra.mxu0 %v1534
  %2098 = vmatpush.msra.mxu0 %v1482
  %2099 = vmatpush.msra.mxu0 %v1478
  %2100 = vmatpush.msra.mxu0 %v1474
  %2101 = vmatpush.msra.mxu0 %v1470
  %2102 = vmatpush.msra.mxu0 %v1418
  %2103 = vmatpush.msra.mxu0 %v1414
  %2104 = vmatpush.msra.mxu0 %v1410
  %2105 = vmatpush.msra.mxu0 %v1406
  %2106 = vmatmul.f32.gmra.mxu0 %v1868
  %v2107 = vpop.f32.mrf.mxu0
  %v2108 = vadd.f32 %v1887, %v2107
  %2109 = vmatmul.f32.gmra.mxu0 %v1871
  %v2110 = vpop.f32.mrf.mxu0
  %v2111 = vadd.f32 %v1892, %v2110
  %2112 = vmatmul.f32.gmra.mxu0 %v1874
  %v2113 = vpop.f32.mrf.mxu0
  %v2114 = vadd.f32 %v1897, %v2113
  %2115 = vmatmul.f32.gmra.mxu0 %v1877
  %v2116 = vpop.f32.mrf.mxu0
  %v2117 = vadd.f32 %v1902, %v2116
  %2118 = vdwg.mxu0
  %2119 = vmatpush.msra.mxu0 %v1802
  %2120 = vmatpush.msra.mxu0 %v1798
  %2121 = vmatpush.msra.mxu0 %v1794
  %2122 = vmatpush.msra.mxu0 %v1790
  %2123 = vmatpush.msra.mxu0 %v1738
  %2124 = vmatpush.msra.mxu0 %v1734
  %2125 = vmatpush.msra.mxu0 %v1730
  %2126 = vmatpush.msra.mxu0 %v1726
  %2127 = vmatpush.msra.mxu0 %v1674
  %2128 = vmatpush.msra.mxu0 %v1670
  %2129 = vmatpush.msra.mxu0 %v1666
  %2130 = vmatpush.msra.mxu0 %v1662
  %2131 = vmatpush.msra.mxu0 %v1354
  %2132 = vmatpush.msra.mxu0 %v1350
  %2133 = vmatpush.msra.mxu0 %v1346
  %2134 = vmatpush.msra.mxu0 %v1342
  %2135 = vmatmul.f32.gmra.mxu0 %v1869
  %v2136 = vpop.f32.mrf.mxu0
  %v2137 = vadd.f32 %v2108, %v2136
  %2138 = vmatmul.f32.gmra.mxu0 %v1872
  %v2139 = vpop.f32.mrf.mxu0
  %v2140 = vadd.f32 %v2111, %v2139
  %2141 = vmatmul.f32.gmra.mxu0 %v1875
  %v2142 = vpop.f32.mrf.mxu0
  %v2143 = vadd.f32 %v2114, %v2142
  %2144 = vmatmul.f32.gmra.mxu0 %v1878
  %v2145 = vpop.f32.mrf.mxu0
  %v2146 = vadd.f32 %v2117, %v2145
  %2147 = vdwg.mxu0
  %2148 = vmatpush.msra.mxu0 0.0
  %2149 = vmatpush.msra.mxu0 0.0
  %2150 = vmatpush.msra.mxu0 0.0
  %2151 = vmatpush.msra.mxu0 0.0
  %2152 = vmatpush.msra.mxu0 0.0
  %2153 = vmatpush.msra.mxu0 0.0
  %2154 = vmatpush.msra.mxu0 0.0
  %2155 = vmatpush.msra.mxu0 0.0
  %2156 = vmatpush.msra.mxu0 0.0
  %2157 = vmatpush.msra.mxu0 0.0
  %2158 = vmatpush.msra.mxu0 0.0
  %2159 = vmatpush.msra.mxu0 0.0
  %2160 = vmatpush.msra.mxu0 %v1866
  %2161 = vmatpush.msra.mxu0 %v1862
  %2162 = vmatpush.msra.mxu0 %v1858
  %2163 = vmatpush.msra.mxu0 %v1854
  %2164 = vmatmul.f32.gmra.mxu0 %v1905
  %v2165 = vpop.f32.mrf.mxu0
  %v2166 = vadd.f32 %v2137, %v2165
  %2167 = vmatmul.f32.gmra.mxu0 %v1908
  %v2168 = vpop.f32.mrf.mxu0
  %v2169 = vadd.f32 %v2140, %v2168
  %2170 = vmatmul.f32.gmra.mxu0 %v1911
  %v2171 = vpop.f32.mrf.mxu0
  %v2172 = vadd.f32 %v2143, %v2171
  %2173 = vmatmul.f32.gmra.mxu0 %v1914
  %v2174 = vpop.f32.mrf.mxu0
  %v2175 = vadd.f32 %v2146, %v2174
  %2176 = vdwg.mxu0
  %2177 = vmatpush.msra.mxu0 %v1611
  %2178 = vmatpush.msra.mxu0 %v1607
  %2179 = vmatpush.msra.mxu0 %v1603
  %2180 = vmatpush.msra.mxu0 %v1599
  %2181 = vmatpush.msra.mxu0 %v1547
  %2182 = vmatpush.msra.mxu0 %v1543
  %2183 = vmatpush.msra.mxu0 %v1539
  %2184 = vmatpush.msra.mxu0 %v1535
  %2185 = vmatpush.msra.mxu0 %v1483
  %2186 = vmatpush.msra.mxu0 %v1479
  %2187 = vmatpush.msra.mxu0 %v1475
  %2188 = vmatpush.msra.mxu0 %v1471
  %2189 = vmatpush.msra.mxu0 %v1419
  %2190 = vmatpush.msra.mxu0 %v1415
  %2191 = vmatpush.msra.mxu0 %v1411
  %2192 = vmatpush.msra.mxu0 %v1407
  %2193 = vmatmul.f32.gmra.mxu0 %v1868
  %v2194 = vpop.f32.mrf.mxu0
  %v2195 = vadd.f32 %v1887, %v2194
  %2196 = vmatmul.f32.gmra.mxu0 %v1871
  %v2197 = vpop.f32.mrf.mxu0
  %v2198 = vadd.f32 %v1892, %v2197
  %2199 = vmatmul.f32.gmra.mxu0 %v1874
  %v2200 = vpop.f32.mrf.mxu0
  %v2201 = vadd.f32 %v1897, %v2200
  %2202 = vmatmul.f32.gmra.mxu0 %v1877
  %v2203 = vpop.f32.mrf.mxu0
  %v2204 = vadd.f32 %v1902, %v2203
  %2205 = vdwg.mxu0
  %2206 = vmatpush.msra.mxu0 %v1803
  %2207 = vmatpush.msra.mxu0 %v1799
  %2208 = vmatpush.msra.mxu0 %v1795
  %2209 = vmatpush.msra.mxu0 %v1791
  %2210 = vmatpush.msra.mxu0 %v1739
  %2211 = vmatpush.msra.mxu0 %v1735
  %2212 = vmatpush.msra.mxu0 %v1731
  %2213 = vmatpush.msra.mxu0 %v1727
  %2214 = vmatpush.msra.mxu0 %v1675
  %2215 = vmatpush.msra.mxu0 %v1671
  %2216 = vmatpush.msra.mxu0 %v1667
  %2217 = vmatpush.msra.mxu0 %v1663
  %2218 = vmatpush.msra.mxu0 %v1355
  %2219 = vmatpush.msra.mxu0 %v1351
  %2220 = vmatpush.msra.mxu0 %v1347
  %2221 = vmatpush.msra.mxu0 %v1343
  %2222 = vmatmul.f32.gmra.mxu0 %v1869
  %v2223 = vpop.f32.mrf.mxu0
  %v2224 = vadd.f32 %v2195, %v2223
  %2225 = vmatmul.f32.gmra.mxu0 %v1872
  %v2226 = vpop.f32.mrf.mxu0
  %v2227 = vadd.f32 %v2198, %v2226
  %2228 = vmatmul.f32.gmra.mxu0 %v1875
  %v2229 = vpop.f32.mrf.mxu0
  %v2230 = vadd.f32 %v2201, %v2229
  %2231 = vmatmul.f32.gmra.mxu0 %v1878
  %v2232 = vpop.f32.mrf.mxu0
  %v2233 = vadd.f32 %v2204, %v2232
  %2234 = vdwg.mxu0
  %2235 = vmatpush.msra.mxu0 0.0
  %2236 = vmatpush.msra.mxu0 0.0
  %2237 = vmatpush.msra.mxu0 0.0
  %2238 = vmatpush.msra.mxu0 0.0
  %2239 = vmatpush.msra.mxu0 0.0
  %2240 = vmatpush.msra.mxu0 0.0
  %2241 = vmatpush.msra.mxu0 0.0
  %2242 = vmatpush.msra.mxu0 0.0
  %2243 = vmatpush.msra.mxu0 0.0
  %2244 = vmatpush.msra.mxu0 0.0
  %2245 = vmatpush.msra.mxu0 0.0
  %2246 = vmatpush.msra.mxu0 0.0
  %2247 = vmatpush.msra.mxu0 %v1867
  %2248 = vmatpush.msra.mxu0 %v1863
  %2249 = vmatpush.msra.mxu0 %v1859
  %2250 = vmatpush.msra.mxu0 %v1855
  %2251 = vmatmul.f32.gmra.mxu0 %v1905
  %v2252 = vpop.f32.mrf.mxu0
  %v2253 = vadd.f32 %v2224, %v2252
  %2254 = vmatmul.f32.gmra.mxu0 %v1908
  %v2255 = vpop.f32.mrf.mxu0
  %v2256 = vadd.f32 %v2227, %v2255
  %2257 = vmatmul.f32.gmra.mxu0 %v1911
  %v2258 = vpop.f32.mrf.mxu0
  %v2259 = vadd.f32 %v2230, %v2258
  %2260 = vmatmul.f32.gmra.mxu0 %v1914
  %v2261 = vpop.f32.mrf.mxu0
  %v2262 = vadd.f32 %v2233, %v2261
  %2263 = vdwg.mxu0
  %v2264 = vadd.f32 %v1992, %v415
  %v2265 = vadd.f32 %v2079, %v416
  %v2266 = vadd.f32 %v2166, %v417
  %v2267 = vadd.f32 %v2253, %v418
  %v2268 = vadd.f32 %v1995, %v419
  %v2269 = vadd.f32 %v2082, %v420
  %v2270 = vadd.f32 %v2169, %v421
  %v2271 = vadd.f32 %v2256, %v422
  %v2272 = vadd.f32 %v1998, %v423
  %v2273 = vadd.f32 %v2085, %v424
  %v2274 = vadd.f32 %v2172, %v425
  %v2275 = vadd.f32 %v2259, %v426
  %v2276 = vadd.f32 %v2001, %v427
  %v2277 = vadd.f32 %v2088, %v428
  %v2278 = vadd.f32 %v2175, %v429
  %v2279 = vadd.f32 %v2262, %v430
  %v2280 = vmax.f32 %v2264, 0.0
  %v2281 = vmax.f32 %v2265, 0.0
  %v2282 = vmax.f32 %v2266, 0.0
  %v2283 = vmax.f32 %v2267, 0.0
  %v2284 = vmax.f32 %v2268, 0.0
  %v2285 = vmax.f32 %v2269, 0.0
  %v2286 = vmax.f32 %v2270, 0.0
  %v2287 = vmax.f32 %v2271, 0.0
  %v2288 = vmax.f32 %v2272, 0.0
  %v2289 = vmax.f32 %v2273, 0.0
  %v2290 = vmax.f32 %v2274, 0.0
  %v2291 = vmax.f32 %v2275, 0.0
  %v2292 = vmax.f32 %v2276, 0.0
  %v2293 = vmax.f32 %v2277, 0.0
  %v2294 = vmax.f32 %v2278, 0.0
  %v2295 = vmax.f32 %v2279, 0.0
  %v2296 = vadd.f32 %v2280, %v2281
  %2297 = vadd.xlane.f32.xlu0 %v2296
  %v2298 = vpop.xlane.xlu0 %2297
  %v2299 = vadd.f32 %v2284, %v2285
  %2300 = vadd.xlane.f32.xlu0 %v2299
  %v2301 = vpop.xlane.xlu0 %2300
  %v2302 = vadd.f32 %v2288, %v2289
  %2303 = vadd.xlane.f32.xlu0 %v2302
  %v2304 = vpop.xlane.xlu0 %2303
  %v2305 = vadd.f32 %v2292, %v2293
  %2306 = vadd.xlane.f32.xlu0 %v2305
  %v2307 = vpop.xlane.xlu0 %2306
  %v2308 = vrcp.pop 256.0
  %v2309 = vmul.f32 256.0, %v2308
  %v2310 = vsub.f32 1.0, %v2309
  %v2311 = vmul.f32 %v2308, %v2310
  %v2312 = vadd.f32 %v2308, %v2311
  %vm2313 = vweird.f32 %v2308
  %v2314 = vsel %vm2313, %v2308, %v2312
  %v2315 = vmul.f32 %v2298, %v2314
  %v2316 = vmul.f32 %v2301, %v2314
  %v2317 = vmul.f32 %v2304, %v2314
  %v2318 = vmul.f32 %v2307, %v2314
  %vm2319 = vcmp.eq.s32.totalorder %v42, 0
  %v2320 = vsel %vm2319, %v2315, 0.0
  %v2321 = vsel %vm2319, %v2316, 0.0
  %v2322 = vsel %vm2319, %v2317, 0.0
  %v2323 = vsel %vm2319, %v2318, 0.0
  %v2324 = vadd.f32 %v2282, %v2283
  %2325 = vadd.xlane.f32.xlu0 %v2324
  %v2326 = vpop.xlane.xlu0 %2325
  %v2327 = vadd.f32 %v2286, %v2287
  %2328 = vadd.xlane.f32.xlu0 %v2327
  %v2329 = vpop.xlane.xlu0 %2328
  %v2330 = vadd.f32 %v2290, %v2291
  %2331 = vadd.xlane.f32.xlu0 %v2330
  %v2332 = vpop.xlane.xlu0 %2331
  %v2333 = vadd.f32 %v2294, %v2295
  %2334 = vadd.xlane.f32.xlu0 %v2333
  %v2335 = vpop.xlane.xlu0 %2334
  %v2336 = vmul.f32 %v2326, %v2314
  %v2337 = vmul.f32 %v2329, %v2314
  %v2338 = vmul.f32 %v2332, %v2314
  %v2339 = vmul.f32 %v2335, %v2314
  %vm2340 = vcmp.eq.s32.totalorder %v42, 1
  %v2341 = vsel %vm2340, %v2336, %v2320
  %v2342 = vsel %vm2340, %v2337, %v2321
  %v2343 = vsel %vm2340, %v2338, %v2322
  %v2344 = vsel %vm2340, %v2339, %v2323
  %vm2345 = vcmask 15360
  %2346 = vst.msk [vmem:[%s8] sm:$0xff] %vm2345, %v2341
  %2347 = vst.msk [vmem:[%s8 + $0x8] sm:$0xff] %vm2345, %v2342
  %2348 = vst.msk [vmem:[%s8 + $0x10] sm:$0xff] %vm2345, %v2343
  %2349 = vst.msk [vmem:[%s8 + $0x18] sm:$0xff] %vm2345, %v2344
  // Predicated region
  $region34: #{encoder_forward.1} parent=0 // pred_check
    _
  $region35: #{encoder_forward.1} parent=0 // pred_check_branch
    %2351 = sbr.rel (0) target = $region37
  $region36: #{encoder_forward.1} parent=0 // pred_region
    _
  $region37: #{encoder_forward.1} parent=0 // pred_fallthru
    _
  // Predicated region
  $region38: #{encoder_forward.1} parent=0 // pred_check
    _
  $region39: #{encoder_forward.1} parent=0 // pred_check_branch
    %2353 = sbr.rel (0) target = $region41
  $region40: #{encoder_forward.1} parent=0 // pred_region
    _
  $region41: #{encoder_forward.1} parent=0 // pred_fallthru
    _

</llo_original>
